<compile_context>
chip_gen: v6e
topology: v6e:2x2x1
jax: 0.10.0
libtpu: 0.0.40
codegen_flags: <defaults>
</compile_context>

<pallas_src>
import functools

import jax
import jax.numpy as jnp
from jax.experimental import pallas as pl
from jax.experimental.pallas import tpu as pltpu

_LANES = 128  # TPU lane width; decoder output is padded to this for dense vst.


# ----------------------------- in-kernel math ------------------------------

def appnp_model_kernel(x_ref, a_ref, wenc_ref, gamma_ref, beta_ref, wdec_ref,
                       o_ref, *, hidden_layers, K, alpha):
    # (1, H) affine params; implicit sublane broadcast at each LN site is
    # cheap and avoids pinning (N, H) copies in vregs across the matmuls.
    gamma = gamma_ref[...]
    beta = beta_ref[...]

    def layernorm(h, eps=1e-5):
        # LayerNorm over channels, PyTorch default eps=1e-5, biased variance.
        mu = jnp.mean(h, axis=-1, keepdims=True)
        var = jnp.mean((h - mu) ** 2, axis=-1, keepdims=True)
        return (h - mu) * jax.lax.rsqrt(var + eps) * gamma + beta

    def gelu(v):
        # Exact GELU (PyTorch nn.GELU default): 0.5*x*(1+erf(x/sqrt(2))).
        return 0.5 * v * (1.0 + jax.lax.erf(v * jnp.float32(0.7071067811865476)))

    # x = enc(x); x = norm(x); x = act(x)
    h = jnp.dot(x_ref[...].astype(jnp.bfloat16), wenc_ref[...],
                preferred_element_type=jnp.float32)
    h = gelu(layernorm(h))

    # for conv in self.conv: x = norm(act(APPNP(x)))
    # a_ref already holds (1 - alpha) * A in bf16; the teleport term is
    # hoisted out of the K loop.
    for _ in range(hidden_layers):          # static, small
        ah0 = jnp.float32(alpha) * h

        def prop_step(_, z):
            return jnp.dot(a_ref[...], z.astype(jnp.bfloat16),
                           preferred_element_type=jnp.float32) + ah0

        z = jax.lax.fori_loop(0, K, prop_step, h, unroll=True)
        h = layernorm(gelu(z))

    # x = dec(x): bf16 lane-padded weight -> unmasked lane-dense bf16 store.
    o_ref[...] = jnp.dot(h.astype(jnp.bfloat16), wdec_ref[...],
                         preferred_element_type=jnp.float32
                         ).astype(o_ref.dtype)


# ------------------------------- wrappers ------------------------------------

def prepare_params(A, w_enc, w_dec, *, alpha):
    """One-time preprocessing (outside the per-call hot path).

    Folds the (1 - alpha) propagation scale into a single bf16 rounding of A,
    converts the encoder weight to bf16, and zero-pads the decoder weight to a
    lane-dense bf16 slab so the kernel's final store is a full unmasked vst.
    """
    H, Cout = w_dec.shape
    cout_pad = max(_LANES, ((Cout + _LANES - 1) // _LANES) * _LANES)
    a_s = ((1.0 - alpha) * A).astype(jnp.bfloat16)
    w_enc_bf16 = w_enc.astype(jnp.bfloat16)
    w_dec_pad = (jnp.zeros((H, cout_pad), jnp.bfloat16)
                 .at[:, :Cout].set(w_dec.astype(jnp.bfloat16)))
    return a_s, w_enc_bf16, w_dec_pad


@functools.partial(jax.jit,
                   static_argnames=("hidden_layers", "K", "alpha", "cout"))
def appnp_forward(x, a_s, w_enc_bf16, gamma, beta, w_dec_pad, *,
                  hidden_layers, K, alpha, cout):
    N = x.shape[0]
    cout_pad = w_dec_pad.shape[1]

    kernel = functools.partial(
        appnp_model_kernel, hidden_layers=hidden_layers, K=K, alpha=alpha)

    vmem_spec = functools.partial(
        pl.BlockSpec, memory_space=pltpu.MemorySpace.VMEM)

    # Tiny problem: everything fits VMEM -> no grid, no pipeline, whole-array
    # VMEM blocks (avoids per-step pipeline bookkeeping and double-buffering).
    out = pl.pallas_call(
        kernel,
        out_shape=jax.ShapeDtypeStruct((N, cout_pad), jnp.bfloat16),
        in_specs=[vmem_spec() for _ in range(6)],
        out_specs=vmem_spec(),
    )(x, a_s, w_enc_bf16, gamma, beta, w_dec_pad)

    # Drop the lane padding, return f32, mimic x.squeeze().  (Fused into the
    # same jit as the kernel -> no extra dispatches.)
    return jnp.squeeze(out[:, :cout].astype(jnp.float32))


# --------------------------- pure-JAX references -----------------------------

def appnp_forward_ref(x, A, w_enc, gamma, beta, w_dec, *, hidden_layers, K,
                      alpha, emulate_bf16=False):
    """Reference forward.  emulate_bf16=True mirrors the kernel's bf16
    matmul operands / output rounding; False is pure-f32 PyTorch semantics."""

    def ln(h):
        mu = jnp.mean(h, axis=-1, keepdims=True)
        var = jnp.mean((h - mu) ** 2, axis=-1, keepdims=True)
        return (h - mu) * jax.lax.rsqrt(var + 1e-5) * gamma + beta

    def gelu(v):
        return 0.5 * v * (1.0 + jax.lax.erf(v * 0.7071067811865476))

    if emulate_bf16:
        a_s = ((1.0 - alpha) * A).astype(jnp.bfloat16)
        prop = lambda z: jnp.dot(a_s, z.astype(jnp.bfloat16),
                                 preferred_element_type=jnp.float32)
        enc = lambda v: jnp.dot(v.astype(jnp.bfloat16),
                                w_enc.astype(jnp.bfloat16),
                                preferred_element_type=jnp.float32)
        dec = lambda v: jnp.dot(v.astype(jnp.bfloat16),
                                w_dec.astype(jnp.bfloat16),
                                preferred_element_type=jnp.float32
                                ).astype(jnp.bfloat16).astype(jnp.float32)
    else:
        prop = lambda z: (1.0 - alpha) * (A @ z)
        enc = lambda v: v @ w_enc
        dec = lambda v: v @ w_dec

    h = gelu(ln(enc(x)))
    for _ in range(hidden_layers):
        ah0 = alpha * h
        z = h
        for _ in range(K):
            z = prop(z) + ah0
        h = ln(gelu(z))
    return jnp.squeeze(dec(h))


# --------------------------------- main --------------------------------------

if __name__ == "__main__":
    # Model(in_channels, hidden_channels, hidden_layers, out_channels,
    #       dropout, alpha, K); dropout is inactive at inference.
    N = 128            # number of graph nodes
    Cin = 32           # in_channels
    H = 64             # hidden_channels
    Cout = 1           # out_channels (BCE head -> squeeze to [N])
    hidden_layers = 2
    alpha = 0.1
    K = 4
    E = 512            # number of edges

    key = jax.random.PRNGKey(0)
    k_x, k_src, k_dst, k_w, k_enc, k_dec = jax.random.split(key, 6)

    # Node features and graph.
    x = jax.random.normal(k_x, (N, Cin), dtype=jnp.float32)
    src = jax.random.randint(k_src, (E,), 0, N)
    dst = jax.random.randint(k_dst, (E,), 0, N)
    edge_weight = jax.random.uniform(k_w, (E,), dtype=jnp.float32)

    # Dense adjacency (glue, plain JAX): A[dst, src] = sum of edge weights,
    # matching 'add' aggregation with duplicate edges summed.
    A = jnp.zeros((N, N), dtype=jnp.float32).at[dst, src].add(edge_weight)

    # Deterministic parameters (PyTorch Linear weight is [out, in]; stored
    # transposed as [in, out] so the kernel computes x @ W directly).
    w_enc = jax.random.normal(k_enc, (Cin, H), dtype=jnp.float32) / jnp.sqrt(Cin)
    w_dec = jax.random.normal(k_dec, (H, Cout), dtype=jnp.float32) / jnp.sqrt(H)
    gamma = jnp.ones((1, H), dtype=jnp.float32)   # LayerNorm weight
    beta = jnp.zeros((1, H), dtype=jnp.float32)   # LayerNorm bias

    # One-time preprocessing of graph + weights (reused across calls).
    a_s, w_enc_bf16, w_dec_pad = prepare_params(A, w_enc, w_dec, alpha=alpha)

    out = appnp_forward(x, a_s, w_enc_bf16, gamma, beta, w_dec_pad,
                        hidden_layers=hidden_layers, K=K, alpha=alpha,
                        cout=Cout)
    out = jax.block_until_ready(out)
    assert out.shape == (N,), out.shape

    # Tight check against a reference that mirrors the kernel's bf16 matmul
    # operands and bf16 output rounding (verifies kernel correctness; small
    # slack absorbs 1-ulp bf16 boundary differences in accumulation order).
    ref_bf16 = appnp_forward_ref(x, A, w_enc, gamma, beta, w_dec,
                                 hidden_layers=hidden_layers, K=K, alpha=alpha,
                                 emulate_bf16=True)
    assert jnp.allclose(out, ref_bf16, atol=3e-2, rtol=3e-2), \
        f"max err vs bf16-emulated ref {jnp.max(jnp.abs(out - ref_bf16))}"

    # Loose sanity check that the bf16 path stays close to the pure f32
    # PyTorch-semantics forward (bf16 rounding accumulates over K steps).
    ref_f32 = appnp_forward_ref(x, A, w_enc, gamma, beta, w_dec,
                                hidden_layers=hidden_layers, K=K, alpha=alpha,
                                emulate_bf16=False)
    assert jnp.allclose(out, ref_f32, atol=3e-1, rtol=3e-1), \
        f"max err vs f32 ref {jnp.max(jnp.abs(out - ref_f32))}"

    print("KERNEL_OK")
</pallas_src>

<mosaic_0001>
module attributes {stable_mosaic.version = 11 : i64} {
  func.func @appnp_model_kernel(%arg0: memref<128x32xf32, #tpu.memory_space<vmem>>, %arg1: memref<128x128xbf16, #tpu.memory_space<vmem>>, %arg2: memref<32x64xbf16, #tpu.memory_space<vmem>>, %arg3: memref<1x64xf32, #tpu.memory_space<vmem>>, %arg4: memref<1x64xf32, #tpu.memory_space<vmem>>, %arg5: memref<64x128xbf16, #tpu.memory_space<vmem>>, %arg6: memref<128x128xbf16, #tpu.memory_space<vmem>>) attributes {dimension_semantics = [], scalar_prefetch = 0 : i64, scratch_operands = 0 : i64, tpu.core_type = #tpu.core_type<tc>} {
    %c0 = arith.constant 0 : index
    %c0_0 = arith.constant 0 : index
    %0 = vector.load %arg3[%c0, %c0_0] : memref<1x64xf32, #tpu.memory_space<vmem>>, vector<1x64xf32>
    %c0_1 = arith.constant 0 : index
    %c0_2 = arith.constant 0 : index
    %1 = vector.load %arg4[%c0_1, %c0_2] : memref<1x64xf32, #tpu.memory_space<vmem>>, vector<1x64xf32>
    %c0_3 = arith.constant 0 : index
    %c0_4 = arith.constant 0 : index
    %2 = vector.load %arg0[%c0_3, %c0_4] : memref<128x32xf32, #tpu.memory_space<vmem>>, vector<128x32xf32>
    %3 = arith.truncf %2 : vector<128x32xf32> to vector<128x32xbf16>
    %c0_5 = arith.constant 0 : index
    %c0_6 = arith.constant 0 : index
    %4 = vector.load %arg2[%c0_5, %c0_6] : memref<32x64xbf16, #tpu.memory_space<vmem>>, vector<32x64xbf16>
    %cst = arith.constant dense<0.000000e+00> : vector<128x64xf32>
    %5 = tpu.matmul %3, %4, %cst {dimension_numbers = #tpu.dot_dimension_numbers<[1], [0], [0], [1], [0, 0, 1, 1], [], []>} : vector<128x32xbf16>, vector<32x64xbf16>, vector<128x64xf32> -> vector<128x64xf32>
    %cst_7 = arith.constant dense<0.000000e+00> : vector<128xf32>
    %6 = vector.multi_reduction <add>, %5, %cst_7 [1] : vector<128x64xf32> to vector<128xf32>
    %7 = vector.shape_cast %6 : vector<128xf32> to vector<128x1xf32>
    %cst_8 = arith.constant 6.400000e+01 : f32
    %8 = vector.broadcast %cst_8 : f32 to vector<128x1xf32>
    %9 = arith.divf %7, %8 : vector<128x1xf32>
    %10 = vector.broadcast %9 : vector<128x1xf32> to vector<128x64xf32>
    %11 = arith.subf %5, %10 : vector<128x64xf32>
    %12 = arith.mulf %11, %11 : vector<128x64xf32>
    %cst_9 = arith.constant dense<0.000000e+00> : vector<128xf32>
    %13 = vector.multi_reduction <add>, %12, %cst_9 [1] : vector<128x64xf32> to vector<128xf32>
    %14 = vector.shape_cast %13 : vector<128xf32> to vector<128x1xf32>
    %cst_10 = arith.constant 6.400000e+01 : f32
    %15 = vector.broadcast %cst_10 : f32 to vector<128x1xf32>
    %16 = arith.divf %14, %15 : vector<128x1xf32>
    %17 = vector.broadcast %9 : vector<128x1xf32> to vector<128x64xf32>
    %18 = arith.subf %5, %17 : vector<128x64xf32>
    %cst_11 = arith.constant 9.99999974E-6 : f32
    %19 = vector.broadcast %cst_11 : f32 to vector<128x1xf32>
    %20 = arith.addf %16, %19 : vector<128x1xf32>
    %21 = math.rsqrt %20 : vector<128x1xf32>
    %22 = vector.broadcast %21 : vector<128x1xf32> to vector<128x64xf32>
    %23 = arith.mulf %18, %22 : vector<128x64xf32>
    %24 = vector.broadcast %0 : vector<1x64xf32> to vector<128x64xf32>
    %25 = arith.mulf %23, %24 : vector<128x64xf32>
    %26 = vector.broadcast %1 : vector<1x64xf32> to vector<128x64xf32>
    %27 = arith.addf %25, %26 : vector<128x64xf32>
    %cst_12 = arith.constant 5.000000e-01 : f32
    %28 = vector.broadcast %cst_12 : f32 to vector<128x64xf32>
    %29 = arith.mulf %28, %27 : vector<128x64xf32>
    %cst_13 = arith.constant 0.707106769 : f32
    %30 = vector.broadcast %cst_13 : f32 to vector<128x64xf32>
    %31 = arith.mulf %27, %30 : vector<128x64xf32>
    %32 = math.erf %31 : vector<128x64xf32>
    %cst_14 = arith.constant 1.000000e+00 : f32
    %33 = vector.broadcast %cst_14 : f32 to vector<128x64xf32>
    %34 = arith.addf %33, %32 : vector<128x64xf32>
    %35 = arith.mulf %29, %34 : vector<128x64xf32>
    %cst_15 = arith.constant 1.000000e-01 : f32
    %36 = vector.broadcast %cst_15 : f32 to vector<128x64xf32>
    %37 = arith.mulf %36, %35 : vector<128x64xf32>
    %c0_i32 = arith.constant 0 : i32
    %c0_16 = arith.constant 0 : index
    %c0_17 = arith.constant 0 : index
    %38 = vector.load %arg1[%c0_16, %c0_17] : memref<128x128xbf16, #tpu.memory_space<vmem>>, vector<128x128xbf16>
    %39 = arith.truncf %35 : vector<128x64xf32> to vector<128x64xbf16>
    %cst_18 = arith.constant dense<0.000000e+00> : vector<128x64xf32>
    %40 = tpu.matmul %38, %39, %cst_18 {dimension_numbers = #tpu.dot_dimension_numbers<[1], [0], [0], [1], [0, 0, 1, 1], [], []>} : vector<128x128xbf16>, vector<128x64xbf16>, vector<128x64xf32> -> vector<128x64xf32>
    %41 = arith.addf %40, %37 : vector<128x64xf32>
    %c1_i32 = arith.constant 1 : i32
    %c0_19 = arith.constant 0 : index
    %c0_20 = arith.constant 0 : index
    %42 = vector.load %arg1[%c0_19, %c0_20] : memref<128x128xbf16, #tpu.memory_space<vmem>>, vector<128x128xbf16>
    %43 = arith.truncf %41 : vector<128x64xf32> to vector<128x64xbf16>
    %cst_21 = arith.constant dense<0.000000e+00> : vector<128x64xf32>
    %44 = tpu.matmul %42, %43, %cst_21 {dimension_numbers = #tpu.dot_dimension_numbers<[1], [0], [0], [1], [0, 0, 1, 1], [], []>} : vector<128x128xbf16>, vector<128x64xbf16>, vector<128x64xf32> -> vector<128x64xf32>
    %45 = arith.addf %44, %37 : vector<128x64xf32>
    %c2_i32 = arith.constant 2 : i32
    %c0_22 = arith.constant 0 : index
    %c0_23 = arith.constant 0 : index
    %46 = vector.load %arg1[%c0_22, %c0_23] : memref<128x128xbf16, #tpu.memory_space<vmem>>, vector<128x128xbf16>
    %47 = arith.truncf %45 : vector<128x64xf32> to vector<128x64xbf16>
    %cst_24 = arith.constant dense<0.000000e+00> : vector<128x64xf32>
    %48 = tpu.matmul %46, %47, %cst_24 {dimension_numbers = #tpu.dot_dimension_numbers<[1], [0], [0], [1], [0, 0, 1, 1], [], []>} : vector<128x128xbf16>, vector<128x64xbf16>, vector<128x64xf32> -> vector<128x64xf32>
    %49 = arith.addf %48, %37 : vector<128x64xf32>
    %c3_i32 = arith.constant 3 : i32
    %c0_25 = arith.constant 0 : index
    %c0_26 = arith.constant 0 : index
    %50 = vector.load %arg1[%c0_25, %c0_26] : memref<128x128xbf16, #tpu.memory_space<vmem>>, vector<128x128xbf16>
    %51 = arith.truncf %49 : vector<128x64xf32> to vector<128x64xbf16>
    %cst_27 = arith.constant dense<0.000000e+00> : vector<128x64xf32>
    %52 = tpu.matmul %50, %51, %cst_27 {dimension_numbers = #tpu.dot_dimension_numbers<[1], [0], [0], [1], [0, 0, 1, 1], [], []>} : vector<128x128xbf16>, vector<128x64xbf16>, vector<128x64xf32> -> vector<128x64xf32>
    %53 = arith.addf %52, %37 : vector<128x64xf32>
    %cst_28 = arith.constant 5.000000e-01 : f32
    %54 = vector.broadcast %cst_28 : f32 to vector<128x64xf32>
    %55 = arith.mulf %54, %53 : vector<128x64xf32>
    %cst_29 = arith.constant 0.707106769 : f32
    %56 = vector.broadcast %cst_29 : f32 to vector<128x64xf32>
    %57 = arith.mulf %53, %56 : vector<128x64xf32>
    %58 = math.erf %57 : vector<128x64xf32>
    %cst_30 = arith.constant 1.000000e+00 : f32
    %59 = vector.broadcast %cst_30 : f32 to vector<128x64xf32>
    %60 = arith.addf %59, %58 : vector<128x64xf32>
    %61 = arith.mulf %55, %60 : vector<128x64xf32>
    %cst_31 = arith.constant dense<0.000000e+00> : vector<128xf32>
    %62 = vector.multi_reduction <add>, %61, %cst_31 [1] : vector<128x64xf32> to vector<128xf32>
    %63 = vector.shape_cast %62 : vector<128xf32> to vector<128x1xf32>
    %cst_32 = arith.constant 6.400000e+01 : f32
    %64 = vector.broadcast %cst_32 : f32 to vector<128x1xf32>
    %65 = arith.divf %63, %64 : vector<128x1xf32>
    %66 = vector.broadcast %65 : vector<128x1xf32> to vector<128x64xf32>
    %67 = arith.subf %61, %66 : vector<128x64xf32>
    %68 = arith.mulf %67, %67 : vector<128x64xf32>
    %cst_33 = arith.constant dense<0.000000e+00> : vector<128xf32>
    %69 = vector.multi_reduction <add>, %68, %cst_33 [1] : vector<128x64xf32> to vector<128xf32>
    %70 = vector.shape_cast %69 : vector<128xf32> to vector<128x1xf32>
    %cst_34 = arith.constant 6.400000e+01 : f32
    %71 = vector.broadcast %cst_34 : f32 to vector<128x1xf32>
    %72 = arith.divf %70, %71 : vector<128x1xf32>
    %73 = vector.broadcast %65 : vector<128x1xf32> to vector<128x64xf32>
    %74 = arith.subf %61, %73 : vector<128x64xf32>
    %cst_35 = arith.constant 9.99999974E-6 : f32
    %75 = vector.broadcast %cst_35 : f32 to vector<128x1xf32>
    %76 = arith.addf %72, %75 : vector<128x1xf32>
    %77 = math.rsqrt %76 : vector<128x1xf32>
    %78 = vector.broadcast %77 : vector<128x1xf32> to vector<128x64xf32>
    %79 = arith.mulf %74, %78 : vector<128x64xf32>
    %80 = vector.broadcast %0 : vector<1x64xf32> to vector<128x64xf32>
    %81 = arith.mulf %79, %80 : vector<128x64xf32>
    %82 = vector.broadcast %1 : vector<1x64xf32> to vector<128x64xf32>
    %83 = arith.addf %81, %82 : vector<128x64xf32>
    %cst_36 = arith.constant 1.000000e-01 : f32
    %84 = vector.broadcast %cst_36 : f32 to vector<128x64xf32>
    %85 = arith.mulf %84, %83 : vector<128x64xf32>
    %c0_i32_37 = arith.constant 0 : i32
    %c0_38 = arith.constant 0 : index
    %c0_39 = arith.constant 0 : index
    %86 = vector.load %arg1[%c0_38, %c0_39] : memref<128x128xbf16, #tpu.memory_space<vmem>>, vector<128x128xbf16>
    %87 = arith.truncf %83 : vector<128x64xf32> to vector<128x64xbf16>
    %cst_40 = arith.constant dense<0.000000e+00> : vector<128x64xf32>
    %88 = tpu.matmul %86, %87, %cst_40 {dimension_numbers = #tpu.dot_dimension_numbers<[1], [0], [0], [1], [0, 0, 1, 1], [], []>} : vector<128x128xbf16>, vector<128x64xbf16>, vector<128x64xf32> -> vector<128x64xf32>
    %89 = arith.addf %88, %85 : vector<128x64xf32>
    %c1_i32_41 = arith.constant 1 : i32
    %c0_42 = arith.constant 0 : index
    %c0_43 = arith.constant 0 : index
    %90 = vector.load %arg1[%c0_42, %c0_43] : memref<128x128xbf16, #tpu.memory_space<vmem>>, vector<128x128xbf16>
    %91 = arith.truncf %89 : vector<128x64xf32> to vector<128x64xbf16>
    %cst_44 = arith.constant dense<0.000000e+00> : vector<128x64xf32>
    %92 = tpu.matmul %90, %91, %cst_44 {dimension_numbers = #tpu.dot_dimension_numbers<[1], [0], [0], [1], [0, 0, 1, 1], [], []>} : vector<128x128xbf16>, vector<128x64xbf16>, vector<128x64xf32> -> vector<128x64xf32>
    %93 = arith.addf %92, %85 : vector<128x64xf32>
    %c2_i32_45 = arith.constant 2 : i32
    %c0_46 = arith.constant 0 : index
    %c0_47 = arith.constant 0 : index
    %94 = vector.load %arg1[%c0_46, %c0_47] : memref<128x128xbf16, #tpu.memory_space<vmem>>, vector<128x128xbf16>
    %95 = arith.truncf %93 : vector<128x64xf32> to vector<128x64xbf16>
    %cst_48 = arith.constant dense<0.000000e+00> : vector<128x64xf32>
    %96 = tpu.matmul %94, %95, %cst_48 {dimension_numbers = #tpu.dot_dimension_numbers<[1], [0], [0], [1], [0, 0, 1, 1], [], []>} : vector<128x128xbf16>, vector<128x64xbf16>, vector<128x64xf32> -> vector<128x64xf32>
    %97 = arith.addf %96, %85 : vector<128x64xf32>
    %c3_i32_49 = arith.constant 3 : i32
    %c0_50 = arith.constant 0 : index
    %c0_51 = arith.constant 0 : index
    %98 = vector.load %arg1[%c0_50, %c0_51] : memref<128x128xbf16, #tpu.memory_space<vmem>>, vector<128x128xbf16>
    %99 = arith.truncf %97 : vector<128x64xf32> to vector<128x64xbf16>
    %cst_52 = arith.constant dense<0.000000e+00> : vector<128x64xf32>
    %100 = tpu.matmul %98, %99, %cst_52 {dimension_numbers = #tpu.dot_dimension_numbers<[1], [0], [0], [1], [0, 0, 1, 1], [], []>} : vector<128x128xbf16>, vector<128x64xbf16>, vector<128x64xf32> -> vector<128x64xf32>
    %101 = arith.addf %100, %85 : vector<128x64xf32>
    %cst_53 = arith.constant 5.000000e-01 : f32
    %102 = vector.broadcast %cst_53 : f32 to vector<128x64xf32>
    %103 = arith.mulf %102, %101 : vector<128x64xf32>
    %cst_54 = arith.constant 0.707106769 : f32
    %104 = vector.broadcast %cst_54 : f32 to vector<128x64xf32>
    %105 = arith.mulf %101, %104 : vector<128x64xf32>
    %106 = math.erf %105 : vector<128x64xf32>
    %cst_55 = arith.constant 1.000000e+00 : f32
    %107 = vector.broadcast %cst_55 : f32 to vector<128x64xf32>
    %108 = arith.addf %107, %106 : vector<128x64xf32>
    %109 = arith.mulf %103, %108 : vector<128x64xf32>
    %cst_56 = arith.constant dense<0.000000e+00> : vector<128xf32>
    %110 = vector.multi_reduction <add>, %109, %cst_56 [1] : vector<128x64xf32> to vector<128xf32>
    %111 = vector.shape_cast %110 : vector<128xf32> to vector<128x1xf32>
    %cst_57 = arith.constant 6.400000e+01 : f32
    %112 = vector.broadcast %cst_57 : f32 to vector<128x1xf32>
    %113 = arith.divf %111, %112 : vector<128x1xf32>
    %114 = vector.broadcast %113 : vector<128x1xf32> to vector<128x64xf32>
    %115 = arith.subf %109, %114 : vector<128x64xf32>
    %116 = arith.mulf %115, %115 : vector<128x64xf32>
    %cst_58 = arith.constant dense<0.000000e+00> : vector<128xf32>
    %117 = vector.multi_reduction <add>, %116, %cst_58 [1] : vector<128x64xf32> to vector<128xf32>
    %118 = vector.shape_cast %117 : vector<128xf32> to vector<128x1xf32>
    %cst_59 = arith.constant 6.400000e+01 : f32
    %119 = vector.broadcast %cst_59 : f32 to vector<128x1xf32>
    %120 = arith.divf %118, %119 : vector<128x1xf32>
    %121 = vector.broadcast %113 : vector<128x1xf32> to vector<128x64xf32>
    %122 = arith.subf %109, %121 : vector<128x64xf32>
    %cst_60 = arith.constant 9.99999974E-6 : f32
    %123 = vector.broadcast %cst_60 : f32 to vector<128x1xf32>
    %124 = arith.addf %120, %123 : vector<128x1xf32>
    %125 = math.rsqrt %124 : vector<128x1xf32>
    %126 = vector.broadcast %125 : vector<128x1xf32> to vector<128x64xf32>
    %127 = arith.mulf %122, %126 : vector<128x64xf32>
    %128 = vector.broadcast %0 : vector<1x64xf32> to vector<128x64xf32>
    %129 = arith.mulf %127, %128 : vector<128x64xf32>
    %130 = vector.broadcast %1 : vector<1x64xf32> to vector<128x64xf32>
    %131 = arith.addf %129, %130 : vector<128x64xf32>
    %132 = arith.truncf %131 : vector<128x64xf32> to vector<128x64xbf16>
    %c0_61 = arith.constant 0 : index
    %c0_62 = arith.constant 0 : index
    %133 = vector.load %arg5[%c0_61, %c0_62] : memref<64x128xbf16, #tpu.memory_space<vmem>>, vector<64x128xbf16>
    %cst_63 = arith.constant dense<0.000000e+00> : vector<128x128xf32>
    %134 = tpu.matmul %132, %133, %cst_63 {dimension_numbers = #tpu.dot_dimension_numbers<[1], [0], [0], [1], [0, 0, 1, 1], [], []>} : vector<128x64xbf16>, vector<64x128xbf16>, vector<128x128xf32> -> vector<128x128xf32>
    %135 = arith.truncf %134 : vector<128x128xf32> to vector<128x128xbf16>
    %c0_64 = arith.constant 0 : index
    %c0_65 = arith.constant 0 : index
    %136 = vector.load %arg6[%c0_64, %c0_65] : memref<128x128xbf16, #tpu.memory_space<vmem>>, vector<128x128xbf16>
    tpu.vector_store %arg6[%c0_64, %c0_65], %135 {strides = array<i32>} : memref<128x128xbf16, #tpu.memory_space<vmem>>, vector<128x128xbf16>,
    return
  }
}

</mosaic_0001>

<llo_original>
// kernel: appnp_forward.1
$region0: #{appnp_forward.1}
  #allocation0 [shape = 'u32[]', space=smem, size = 0x4, offset = 0x4, fixed_abs, tag = 'smem constant byte address 0x4 - core index']
  #allocation1 [shape = 'u32[144,128]{1,0:T(1,128)}', space=vmem, size = 0x12000, scoped, tag = 'internal scratch']
  %s0 = inlined_call_operand.vmem [shape: f32[128,32], index: 0, kind: input, shape index: {}]
  %s1 = inlined_call_operand.vmem [shape: bf16[128,128], index: 1, kind: input, shape index: {}]
  %s2 = inlined_call_operand.vmem [shape: bf16[32,64], index: 2, kind: input, shape index: {}]
  %s3 = inlined_call_operand.vmem [shape: f32[1,64], index: 3, kind: input, shape index: {}]
  %s4 = inlined_call_operand.vmem [shape: f32[1,64], index: 4, kind: input, shape index: {}]
  %s5 = inlined_call_operand.vmem [shape: bf16[64,128], index: 5, kind: input, shape index: {}]
  %s6 = inlined_call_operand.vmem [shape: bf16[128,128], index: 6, kind: output, shape index: {}]
  %s7 = sld [smem:[#allocation0]]
  $region34: #{appnp_forward.1} parent=0
    _
  %s9 = ssub.s32 1, %s7
  %s10 = scalar_select 0, %s9, %s7
  // Predicated region
  $region2: #{appnp_forward.1} parent=0 // pred_check
    _
  $region3: #{appnp_forward.1} parent=0 // pred_check_branch
    %12 = sbr.rel (0) target = $region5
  $region4: #{appnp_forward.1} parent=0 // pred_region
    _
  $region5: #{appnp_forward.1} parent=0 // pred_fallthru
    _
  // Predicated region
  $region6: #{appnp_forward.1} parent=0 // pred_check
    _
  $region7: #{appnp_forward.1} parent=0 // pred_check_branch
    %14 = sbr.rel (0) target = $region9
  $region8: #{appnp_forward.1} parent=0 // pred_region
    _
  $region9: #{appnp_forward.1} parent=0 // pred_fallthru
    _
  // Predicated region
  $region10: #{appnp_forward.1} parent=0 // pred_check
    _
  $region11: #{appnp_forward.1} parent=0 // pred_check_branch
    %16 = sbr.rel (0) target = $region13
  $region12: #{appnp_forward.1} parent=0 // pred_region
    _
  $region13: #{appnp_forward.1} parent=0 // pred_fallthru
    _
  // Predicated region
  $region14: #{appnp_forward.1} parent=0 // pred_check
    _
  $region15: #{appnp_forward.1} parent=0 // pred_check_branch
    %18 = sbr.rel (0) target = $region17
  $region16: #{appnp_forward.1} parent=0 // pred_region
    _
  $region17: #{appnp_forward.1} parent=0 // pred_fallthru
    _
  // Predicated region
  $region18: #{appnp_forward.1} parent=0 // pred_check
    _
  $region19: #{appnp_forward.1} parent=0 // pred_check_branch
    %20 = sbr.rel (0) target = $region21
  $region20: #{appnp_forward.1} parent=0 // pred_region
    _
  $region21: #{appnp_forward.1} parent=0 // pred_fallthru
    _
  // Predicated region
  $region22: #{appnp_forward.1} parent=0 // pred_check
    _
  $region23: #{appnp_forward.1} parent=0 // pred_check_branch
    %22 = sbr.rel (0) target = $region25
  $region24: #{appnp_forward.1} parent=0 // pred_region
    _
  $region25: #{appnp_forward.1} parent=0 // pred_fallthru
    _
  %v24 = vld [vmem:[%s3] sm:$0x1]
  %v25 = vld [vmem:[%s4] sm:$0x1]
  %v26 = vld [vmem:[%s0] sm:$0xff]
  %v27 = vld [vmem:[%s0 + $0x8] sm:$0xff]
  %v28 = vld [vmem:[%s0 + $0x10] sm:$0xff]
  %v29 = vld [vmem:[%s0 + $0x18] sm:$0xff]
  %v30 = vld [vmem:[%s0 + $0x20] sm:$0xff]
  %v31 = vld [vmem:[%s0 + $0x28] sm:$0xff]
  %v32 = vld [vmem:[%s0 + $0x30] sm:$0xff]
  %v33 = vld [vmem:[%s0 + $0x38] sm:$0xff]
  %v34 = vld [vmem:[%s0 + $0x40] sm:$0xff]
  %v35 = vld [vmem:[%s0 + $0x48] sm:$0xff]
  %v36 = vld [vmem:[%s0 + $0x50] sm:$0xff]
  %v37 = vld [vmem:[%s0 + $0x58] sm:$0xff]
  %v38 = vld [vmem:[%s0 + $0x60] sm:$0xff]
  %v39 = vld [vmem:[%s0 + $0x68] sm:$0xff]
  %v40 = vld [vmem:[%s0 + $0x70] sm:$0xff]
  %v41 = vld [vmem:[%s0 + $0x78] sm:$0xff]
  %v42 = vpack.c.bf16 %v27, %v26
  %v43 = vpack.c.bf16 %v29, %v28
  %v44 = vpack.c.bf16 %v31, %v30
  %v45 = vpack.c.bf16 %v33, %v32
  %v46 = vpack.c.bf16 %v35, %v34
  %v47 = vpack.c.bf16 %v37, %v36
  %v48 = vpack.c.bf16 %v39, %v38
  %v49 = vpack.c.bf16 %v41, %v40
  %v50 = vld [vmem:[%s2] sm:$0xf]
  %v51 = vld [vmem:[%s2 + $0x4] sm:$0xf]
  %v52 = vld [vmem:[%s2 + $0x8] sm:$0xf]
  %v53 = vld [vmem:[%s2 + $0xc] sm:$0xf]
  %v58 = vunpack.c.l.b16 %v50
  %v59 = vunpack.c.l.b16 %v51
  %v60 = vunpack.c.l.b16 %v52
  %v61 = vunpack.c.l.b16 %v53
  %v62 = vpack.c.b16 %v59, %v58
  %v63 = vpack.c.b16 %v61, %v60
  %vm66 = vcmask 261120
  %v68 = vsel %vm66, %v42, 0
  %v71 = vsel %vm66, %v43, 0
  %v74 = vsel %vm66, %v44, 0
  %v77 = vsel %vm66, %v45, 0
  %v80 = vsel %vm66, %v46, 0
  %v83 = vsel %vm66, %v47, 0
  %v86 = vsel %vm66, %v48, 0
  %v89 = vsel %vm66, %v49, 0
  %91 = vmatprep.subr.bf16.mxu0 0
  %92 = vmatpush1.bf16.msra.mxu0 0
  %93 = vmatprep.subr.bf16.mxu0 0
  %94 = vmatpush1.bf16.msra.mxu0 0
  %95 = vmatprep.subr.bf16.mxu0 0
  %96 = vmatpush1.bf16.msra.mxu0 0
  %97 = vmatprep.subr.bf16.mxu0 0
  %98 = vmatpush1.bf16.msra.mxu0 0
  %99 = vmatprep.subr.bf16.mxu0 0
  %100 = vmatpush1.bf16.msra.mxu0 0
  %101 = vmatprep.subr.bf16.mxu0 0
  %102 = vmatpush1.bf16.msra.mxu0 0
  %103 = vmatprep.subr.bf16.mxu0 0
  %104 = vmatpush1.bf16.msra.mxu0 %v63
  %105 = vmatprep.subr.bf16.mxu0 0
  %106 = vmatpush1.bf16.msra.mxu0 %v62
  %107 = vmatprep.subr.bf16.mxu0 0
  %108 = vmatpush2.bf16.msra.mxu0 0
  %109 = vmatprep.subr.bf16.mxu0 0
  %110 = vmatpush2.bf16.msra.mxu0 0
  %111 = vmatprep.subr.bf16.mxu0 0
  %112 = vmatpush2.bf16.msra.mxu0 0
  %113 = vmatprep.subr.bf16.mxu0 0
  %114 = vmatpush2.bf16.msra.mxu0 0
  %115 = vmatprep.subr.bf16.mxu0 0
  %116 = vmatpush2.bf16.msra.mxu0 0
  %117 = vmatprep.subr.bf16.mxu0 0
  %118 = vmatpush2.bf16.msra.mxu0 0
  %119 = vmatprep.subr.bf16.mxu0 0
  %120 = vmatpush2.bf16.msra.mxu0 0
  %121 = vmatprep.subr.bf16.mxu0 0
  %122 = vmatpush2.bf16.msra.mxu0 0
  %123 = vmatprep.mubr.bf16.mxu0 0
  %124 = vmatmul.mubr.bf16.gmra.mxu0 %v68
  %v125 = vpop.f32.mrf.mxu0
  %v126 = vadd.f32 0.0, %v125
  %v127 = vpop.f32.mrf.mxu0
  %v128 = vpop.f32.mrf.mxu0
  %v129 = vadd.f32 0.0, %v128
  %v130 = vpop.f32.mrf.mxu0
  %131 = vmatprep.mubr.bf16.mxu0 0
  %132 = vmatmul.mubr.bf16.gmra.mxu0 %v71
  %v133 = vpop.f32.mrf.mxu0
  %v134 = vadd.f32 0.0, %v133
  %v135 = vpop.f32.mrf.mxu0
  %v136 = vpop.f32.mrf.mxu0
  %v137 = vadd.f32 0.0, %v136
  %v138 = vpop.f32.mrf.mxu0
  %139 = vmatprep.mubr.bf16.mxu0 0
  %140 = vmatmul.mubr.bf16.gmra.mxu0 %v74
  %v141 = vpop.f32.mrf.mxu0
  %v142 = vadd.f32 0.0, %v141
  %v143 = vpop.f32.mrf.mxu0
  %v144 = vpop.f32.mrf.mxu0
  %v145 = vadd.f32 0.0, %v144
  %v146 = vpop.f32.mrf.mxu0
  %147 = vmatprep.mubr.bf16.mxu0 0
  %148 = vmatmul.mubr.bf16.gmra.mxu0 %v77
  %v149 = vpop.f32.mrf.mxu0
  %v150 = vadd.f32 0.0, %v149
  %v151 = vpop.f32.mrf.mxu0
  %v152 = vpop.f32.mrf.mxu0
  %v153 = vadd.f32 0.0, %v152
  %v154 = vpop.f32.mrf.mxu0
  %155 = vmatprep.mubr.bf16.mxu0 0
  %156 = vmatmul.mubr.bf16.gmra.mxu0 %v80
  %v157 = vpop.f32.mrf.mxu0
  %v158 = vadd.f32 0.0, %v157
  %v159 = vpop.f32.mrf.mxu0
  %v160 = vpop.f32.mrf.mxu0
  %v161 = vadd.f32 0.0, %v160
  %v162 = vpop.f32.mrf.mxu0
  %163 = vmatprep.mubr.bf16.mxu0 0
  %164 = vmatmul.mubr.bf16.gmra.mxu0 %v83
  %v165 = vpop.f32.mrf.mxu0
  %v166 = vadd.f32 0.0, %v165
  %v167 = vpop.f32.mrf.mxu0
  %v168 = vpop.f32.mrf.mxu0
  %v169 = vadd.f32 0.0, %v168
  %v170 = vpop.f32.mrf.mxu0
  %171 = vmatprep.mubr.bf16.mxu0 0
  %172 = vmatmul.mubr.bf16.gmra.mxu0 %v86
  %v173 = vpop.f32.mrf.mxu0
  %v174 = vadd.f32 0.0, %v173
  %v175 = vpop.f32.mrf.mxu0
  %v176 = vpop.f32.mrf.mxu0
  %v177 = vadd.f32 0.0, %v176
  %v178 = vpop.f32.mrf.mxu0
  %179 = vmatprep.mubr.bf16.mxu0 0
  %180 = vmatmul.mubr.bf16.gmra.mxu0 %v89
  %v181 = vpop.f32.mrf.mxu0
  %v182 = vadd.f32 0.0, %v181
  %v183 = vpop.f32.mrf.mxu0
  %v184 = vpop.f32.mrf.mxu0
  %v185 = vadd.f32 0.0, %v184
  %v186 = vpop.f32.mrf.mxu0
  %187 = vdwg.mxu0
  %vm188 = vcmask 523264
  %v189 = vsel %vm188, %v126, 0.0
  %190 = vadd.xlane.f32.xlu0 %v189
  %v191 = vpop.xlane.xlu0 %190
  %v192 = vsel %vm188, %v129, 0.0
  %193 = vadd.xlane.f32.xlu0 %v192
  %v194 = vpop.xlane.xlu0 %193
  %v195 = vsel %vm188, %v134, 0.0
  %196 = vadd.xlane.f32.xlu0 %v195
  %v197 = vpop.xlane.xlu0 %196
  %v198 = vsel %vm188, %v137, 0.0
  %199 = vadd.xlane.f32.xlu0 %v198
  %v200 = vpop.xlane.xlu0 %199
  %v201 = vsel %vm188, %v142, 0.0
  %202 = vadd.xlane.f32.xlu0 %v201
  %v203 = vpop.xlane.xlu0 %202
  %v204 = vsel %vm188, %v145, 0.0
  %205 = vadd.xlane.f32.xlu0 %v204
  %v206 = vpop.xlane.xlu0 %205
  %v207 = vsel %vm188, %v150, 0.0
  %208 = vadd.xlane.f32.xlu0 %v207
  %v209 = vpop.xlane.xlu0 %208
  %v210 = vsel %vm188, %v153, 0.0
  %211 = vadd.xlane.f32.xlu0 %v210
  %v212 = vpop.xlane.xlu0 %211
  %v213 = vsel %vm188, %v158, 0.0
  %214 = vadd.xlane.f32.xlu0 %v213
  %v215 = vpop.xlane.xlu0 %214
  %v216 = vsel %vm188, %v161, 0.0
  %217 = vadd.xlane.f32.xlu0 %v216
  %v218 = vpop.xlane.xlu0 %217
  %v219 = vsel %vm188, %v166, 0.0
  %220 = vadd.xlane.f32.xlu0 %v219
  %v221 = vpop.xlane.xlu0 %220
  %v222 = vsel %vm188, %v169, 0.0
  %223 = vadd.xlane.f32.xlu0 %v222
  %v224 = vpop.xlane.xlu0 %223
  %v225 = vsel %vm188, %v174, 0.0
  %226 = vadd.xlane.f32.xlu0 %v225
  %v227 = vpop.xlane.xlu0 %226
  %v228 = vsel %vm188, %v177, 0.0
  %229 = vadd.xlane.f32.xlu0 %v228
  %v230 = vpop.xlane.xlu0 %229
  %v231 = vsel %vm188, %v182, 0.0
  %232 = vadd.xlane.f32.xlu0 %v231
  %v233 = vpop.xlane.xlu0 %232
  %v234 = vsel %vm188, %v185, 0.0
  %235 = vadd.xlane.f32.xlu0 %v234
  %v236 = vpop.xlane.xlu0 %235
  %v237 = vrcp.pop 64.0
  %v238 = vmul.f32 %v191, %v237
  %v239 = vmul.f32 %v194, %v237
  %v240 = vmul.f32 %v197, %v237
  %v241 = vmul.f32 %v200, %v237
  %v242 = vmul.f32 %v203, %v237
  %v243 = vmul.f32 %v206, %v237
  %v244 = vmul.f32 %v209, %v237
  %v245 = vmul.f32 %v212, %v237
  %v246 = vmul.f32 %v215, %v237
  %v247 = vmul.f32 %v218, %v237
  %v248 = vmul.f32 %v221, %v237
  %v249 = vmul.f32 %v224, %v237
  %v250 = vmul.f32 %v227, %v237
  %v251 = vmul.f32 %v230, %v237
  %v252 = vmul.f32 %v233, %v237
  %v253 = vmul.f32 %v236, %v237
  %v254 = vsub.f32 %v126, %v238
  %v255 = vsub.f32 %v129, %v239
  %v256 = vsub.f32 %v134, %v240
  %v257 = vsub.f32 %v137, %v241
  %v258 = vsub.f32 %v142, %v242
  %v259 = vsub.f32 %v145, %v243
  %v260 = vsub.f32 %v150, %v244
  %v261 = vsub.f32 %v153, %v245
  %v262 = vsub.f32 %v158, %v246
  %v263 = vsub.f32 %v161, %v247
  %v264 = vsub.f32 %v166, %v248
  %v265 = vsub.f32 %v169, %v249
  %v266 = vsub.f32 %v174, %v250
  %v267 = vsub.f32 %v177, %v251
  %v268 = vsub.f32 %v182, %v252
  %v269 = vsub.f32 %v185, %v253
  %v270 = vmul.f32 %v254, %v254
  %v271 = vmul.f32 %v255, %v255
  %v272 = vmul.f32 %v256, %v256
  %v273 = vmul.f32 %v257, %v257
  %v274 = vmul.f32 %v258, %v258
  %v275 = vmul.f32 %v259, %v259
  %v276 = vmul.f32 %v260, %v260
  %v277 = vmul.f32 %v261, %v261
  %v278 = vmul.f32 %v262, %v262
  %v279 = vmul.f32 %v263, %v263
  %v280 = vmul.f32 %v264, %v264
  %v281 = vmul.f32 %v265, %v265
  %v282 = vmul.f32 %v266, %v266
  %v283 = vmul.f32 %v267, %v267
  %v284 = vmul.f32 %v268, %v268
  %v285 = vmul.f32 %v269, %v269
  %v286 = vsel %vm188, %v270, 0.0
  %287 = vadd.xlane.f32.xlu0 %v286
  %v288 = vpop.xlane.xlu0 %287
  %v289 = vsel %vm188, %v271, 0.0
  %290 = vadd.xlane.f32.xlu0 %v289
  %v291 = vpop.xlane.xlu0 %290
  %v292 = vsel %vm188, %v272, 0.0
  %293 = vadd.xlane.f32.xlu0 %v292
  %v294 = vpop.xlane.xlu0 %293
  %v295 = vsel %vm188, %v273, 0.0
  %296 = vadd.xlane.f32.xlu0 %v295
  %v297 = vpop.xlane.xlu0 %296
  %v298 = vsel %vm188, %v274, 0.0
  %299 = vadd.xlane.f32.xlu0 %v298
  %v300 = vpop.xlane.xlu0 %299
  %v301 = vsel %vm188, %v275, 0.0
  %302 = vadd.xlane.f32.xlu0 %v301
  %v303 = vpop.xlane.xlu0 %302
  %v304 = vsel %vm188, %v276, 0.0
  %305 = vadd.xlane.f32.xlu0 %v304
  %v306 = vpop.xlane.xlu0 %305
  %v307 = vsel %vm188, %v277, 0.0
  %308 = vadd.xlane.f32.xlu0 %v307
  %v309 = vpop.xlane.xlu0 %308
  %v310 = vsel %vm188, %v278, 0.0
  %311 = vadd.xlane.f32.xlu0 %v310
  %v312 = vpop.xlane.xlu0 %311
  %v313 = vsel %vm188, %v279, 0.0
  %314 = vadd.xlane.f32.xlu0 %v313
  %v315 = vpop.xlane.xlu0 %314
  %v316 = vsel %vm188, %v280, 0.0
  %317 = vadd.xlane.f32.xlu0 %v316
  %v318 = vpop.xlane.xlu0 %317
  %v319 = vsel %vm188, %v281, 0.0
  %320 = vadd.xlane.f32.xlu0 %v319
  %v321 = vpop.xlane.xlu0 %320
  %v322 = vsel %vm188, %v282, 0.0
  %323 = vadd.xlane.f32.xlu0 %v322
  %v324 = vpop.xlane.xlu0 %323
  %v325 = vsel %vm188, %v283, 0.0
  %326 = vadd.xlane.f32.xlu0 %v325
  %v327 = vpop.xlane.xlu0 %326
  %v328 = vsel %vm188, %v284, 0.0
  %329 = vadd.xlane.f32.xlu0 %v328
  %v330 = vpop.xlane.xlu0 %329
  %v331 = vsel %vm188, %v285, 0.0
  %332 = vadd.xlane.f32.xlu0 %v331
  %v333 = vpop.xlane.xlu0 %332
  %v334 = vmul.f32 %v288, %v237
  %v335 = vmul.f32 %v291, %v237
  %v336 = vmul.f32 %v294, %v237
  %v337 = vmul.f32 %v297, %v237
  %v338 = vmul.f32 %v300, %v237
  %v339 = vmul.f32 %v303, %v237
  %v340 = vmul.f32 %v306, %v237
  %v341 = vmul.f32 %v309, %v237
  %v342 = vmul.f32 %v312, %v237
  %v343 = vmul.f32 %v315, %v237
  %v344 = vmul.f32 %v318, %v237
  %v345 = vmul.f32 %v321, %v237
  %v346 = vmul.f32 %v324, %v237
  %v347 = vmul.f32 %v327, %v237
  %v348 = vmul.f32 %v330, %v237
  %v349 = vmul.f32 %v333, %v237
  %v350 = vadd.f32 %v334, 1e-05
  %v351 = vadd.f32 %v335, 1e-05
  %v352 = vadd.f32 %v336, 1e-05
  %v353 = vadd.f32 %v337, 1e-05
  %v354 = vadd.f32 %v338, 1e-05
  %v355 = vadd.f32 %v339, 1e-05
  %v356 = vadd.f32 %v340, 1e-05
  %v357 = vadd.f32 %v341, 1e-05
  %v358 = vadd.f32 %v342, 1e-05
  %v359 = vadd.f32 %v343, 1e-05
  %v360 = vadd.f32 %v344, 1e-05
  %v361 = vadd.f32 %v345, 1e-05
  %v362 = vadd.f32 %v346, 1e-05
  %v363 = vadd.f32 %v347, 1e-05
  %v364 = vadd.f32 %v348, 1e-05
  %v365 = vadd.f32 %v349, 1e-05
  %v366 = vrsqrt.pop %v350
  %v367 = vrsqrt.pop %v351
  %v368 = vrsqrt.pop %v352
  %v369 = vrsqrt.pop %v353
  %v370 = vrsqrt.pop %v354
  %v371 = vrsqrt.pop %v355
  %v372 = vrsqrt.pop %v356
  %v373 = vrsqrt.pop %v357
  %v374 = vrsqrt.pop %v358
  %v375 = vrsqrt.pop %v359
  %v376 = vrsqrt.pop %v360
  %v377 = vrsqrt.pop %v361
  %v378 = vrsqrt.pop %v362
  %v379 = vrsqrt.pop %v363
  %v380 = vrsqrt.pop %v364
  %v381 = vrsqrt.pop %v365
  %v382 = vmul.f32 %v254, %v366
  %v383 = vmul.f32 %v255, %v367
  %v384 = vmul.f32 %v256, %v368
  %v385 = vmul.f32 %v257, %v369
  %v386 = vmul.f32 %v258, %v370
  %v387 = vmul.f32 %v259, %v371
  %v388 = vmul.f32 %v260, %v372
  %v389 = vmul.f32 %v261, %v373
  %v390 = vmul.f32 %v262, %v374
  %v391 = vmul.f32 %v263, %v375
  %v392 = vmul.f32 %v264, %v376
  %v393 = vmul.f32 %v265, %v377
  %v394 = vmul.f32 %v266, %v378
  %v395 = vmul.f32 %v267, %v379
  %v396 = vmul.f32 %v268, %v380
  %v397 = vmul.f32 %v269, %v381
  %v399 = vlaneseq
  %v400 = vshrl.u32 %v399, 7
  %v401 = vsub.s32 0, %v400
  %v402 = vrot.slane %v24, %v401
  %v404 = vmul.f32 %v382, %v402
  %v405 = vmul.f32 %v383, %v402
  %v406 = vmul.f32 %v384, %v402
  %v407 = vmul.f32 %v385, %v402
  %v408 = vmul.f32 %v386, %v402
  %v409 = vmul.f32 %v387, %v402
  %v410 = vmul.f32 %v388, %v402
  %v411 = vmul.f32 %v389, %v402
  %v412 = vmul.f32 %v390, %v402
  %v413 = vmul.f32 %v391, %v402
  %v414 = vmul.f32 %v392, %v402
  %v415 = vmul.f32 %v393, %v402
  %v416 = vmul.f32 %v394, %v402
  %v417 = vmul.f32 %v395, %v402
  %v418 = vmul.f32 %v396, %v402
  %v419 = vmul.f32 %v397, %v402
  %v421 = vlaneseq
  %v422 = vshrl.u32 %v421, 7
  %v423 = vsub.s32 0, %v422
  %v424 = vrot.slane %v25, %v423
  %v426 = vadd.f32 %v404, %v424
  %v427 = vadd.f32 %v405, %v424
  %v428 = vadd.f32 %v406, %v424
  %v429 = vadd.f32 %v407, %v424
  %v430 = vadd.f32 %v408, %v424
  %v431 = vadd.f32 %v409, %v424
  %v432 = vadd.f32 %v410, %v424
  %v433 = vadd.f32 %v411, %v424
  %v434 = vadd.f32 %v412, %v424
  %v435 = vadd.f32 %v413, %v424
  %v436 = vadd.f32 %v414, %v424
  %v437 = vadd.f32 %v415, %v424
  %v438 = vadd.f32 %v416, %v424
  %v439 = vadd.f32 %v417, %v424
  %v440 = vadd.f32 %v418, %v424
  %v441 = vadd.f32 %v419, %v424
  %v442 = vmul.f32 %v426, 0.5
  %v443 = vmul.f32 %v427, 0.5
  %v444 = vmul.f32 %v428, 0.5
  %v445 = vmul.f32 %v429, 0.5
  %v446 = vmul.f32 %v430, 0.5
  %v447 = vmul.f32 %v431, 0.5
  %v448 = vmul.f32 %v432, 0.5
  %v449 = vmul.f32 %v433, 0.5
  %v450 = vmul.f32 %v434, 0.5
  %v451 = vmul.f32 %v435, 0.5
  %v452 = vmul.f32 %v436, 0.5
  %v453 = vmul.f32 %v437, 0.5
  %v454 = vmul.f32 %v438, 0.5
  %v455 = vmul.f32 %v439, 0.5
  %v456 = vmul.f32 %v440, 0.5
  %v457 = vmul.f32 %v441, 0.5
  %v458 = vmul.f32 %v426, 0.70710677
  %v459 = vmul.f32 %v427, 0.70710677
  %v460 = vmul.f32 %v428, 0.70710677
  %v461 = vmul.f32 %v429, 0.70710677
  %v462 = vmul.f32 %v430, 0.70710677
  %v463 = vmul.f32 %v431, 0.70710677
  %v464 = vmul.f32 %v432, 0.70710677
  %v465 = vmul.f32 %v433, 0.70710677
  %v466 = vmul.f32 %v434, 0.70710677
  %v467 = vmul.f32 %v435, 0.70710677
  %v468 = vmul.f32 %v436, 0.70710677
  %v469 = vmul.f32 %v437, 0.70710677
  %v470 = vmul.f32 %v438, 0.70710677
  %v471 = vmul.f32 %v439, 0.70710677
  %v472 = vmul.f32 %v440, 0.70710677
  %v473 = vmul.f32 %v441, 0.70710677
  %v474 = verf.f32.pop %v458
  %v475 = verf.f32.pop %v459
  %v476 = verf.f32.pop %v460
  %v477 = verf.f32.pop %v461
  %v478 = verf.f32.pop %v462
  %v479 = verf.f32.pop %v463
  %v480 = verf.f32.pop %v464
  %v481 = verf.f32.pop %v465
  %v482 = verf.f32.pop %v466
  %v483 = verf.f32.pop %v467
  %v484 = verf.f32.pop %v468
  %v485 = verf.f32.pop %v469
  %v486 = verf.f32.pop %v470
  %v487 = verf.f32.pop %v471
  %v488 = verf.f32.pop %v472
  %v489 = verf.f32.pop %v473
  %v490 = vadd.f32 %v474, 1.0
  %v491 = vadd.f32 %v475, 1.0
  %v492 = vadd.f32 %v476, 1.0
  %v493 = vadd.f32 %v477, 1.0
  %v494 = vadd.f32 %v478, 1.0
  %v495 = vadd.f32 %v479, 1.0
  %v496 = vadd.f32 %v480, 1.0
  %v497 = vadd.f32 %v481, 1.0
  %v498 = vadd.f32 %v482, 1.0
  %v499 = vadd.f32 %v483, 1.0
  %v500 = vadd.f32 %v484, 1.0
  %v501 = vadd.f32 %v485, 1.0
  %v502 = vadd.f32 %v486, 1.0
  %v503 = vadd.f32 %v487, 1.0
  %v504 = vadd.f32 %v488, 1.0
  %v505 = vadd.f32 %v489, 1.0
  %v506 = vmul.f32 %v442, %v490
  %v507 = vmul.f32 %v443, %v491
  %v508 = vmul.f32 %v444, %v492
  %v509 = vmul.f32 %v445, %v493
  %v510 = vmul.f32 %v446, %v494
  %v511 = vmul.f32 %v447, %v495
  %v512 = vmul.f32 %v448, %v496
  %v513 = vmul.f32 %v449, %v497
  %v514 = vmul.f32 %v450, %v498
  %v515 = vmul.f32 %v451, %v499
  %v516 = vmul.f32 %v452, %v500
  %v517 = vmul.f32 %v453, %v501
  %v518 = vmul.f32 %v454, %v502
  %v519 = vmul.f32 %v455, %v503
  %v520 = vmul.f32 %v456, %v504
  %v521 = vmul.f32 %v457, %v505
  %v522 = vmul.f32 %v506, 0.1
  %v523 = vmul.f32 %v507, 0.1
  %v524 = vmul.f32 %v508, 0.1
  %v525 = vmul.f32 %v509, 0.1
  %v526 = vmul.f32 %v510, 0.1
  %v527 = vmul.f32 %v511, 0.1
  %v528 = vmul.f32 %v512, 0.1
  %v529 = vmul.f32 %v513, 0.1
  %v530 = vmul.f32 %v514, 0.1
  %v531 = vmul.f32 %v515, 0.1
  %v532 = vmul.f32 %v516, 0.1
  %v533 = vmul.f32 %v517, 0.1
  %v534 = vmul.f32 %v518, 0.1
  %v535 = vmul.f32 %v519, 0.1
  %v536 = vmul.f32 %v520, 0.1
  %v537 = vmul.f32 %v521, 0.1
  %v538 = vld [vmem:[%s1] sm:$0xf]
  %v539 = vld [vmem:[%s1 + $0x4] sm:$0xf]
  %v540 = vld [vmem:[%s1 + $0x8] sm:$0xf]
  %v541 = vld [vmem:[%s1 + $0xc] sm:$0xf]
  %v542 = vld [vmem:[%s1 + $0x10] sm:$0xf]
  %v543 = vld [vmem:[%s1 + $0x14] sm:$0xf]
  %v544 = vld [vmem:[%s1 + $0x18] sm:$0xf]
  %v545 = vld [vmem:[%s1 + $0x1c] sm:$0xf]
  %v546 = vld [vmem:[%s1 + $0x20] sm:$0xf]
  %v547 = vld [vmem:[%s1 + $0x24] sm:$0xf]
  %v548 = vld [vmem:[%s1 + $0x28] sm:$0xf]
  %v549 = vld [vmem:[%s1 + $0x2c] sm:$0xf]
  %v550 = vld [vmem:[%s1 + $0x30] sm:$0xf]
  %v551 = vld [vmem:[%s1 + $0x34] sm:$0xf]
  %v552 = vld [vmem:[%s1 + $0x38] sm:$0xf]
  %v553 = vld [vmem:[%s1 + $0x3c] sm:$0xf]
  %v554 = vpack.c.bf16 %v507, %v506
  %v555 = vpack.c.bf16 %v509, %v508
  %v556 = vpack.c.bf16 %v511, %v510
  %v557 = vpack.c.bf16 %v513, %v512
  %v558 = vpack.c.bf16 %v515, %v514
  %v559 = vpack.c.bf16 %v517, %v516
  %v560 = vpack.c.bf16 %v519, %v518
  %v561 = vpack.c.bf16 %v521, %v520
  %v578 = vunpack.c.l.b16 %v538
  %v579 = vunpack.c.l.b16 %v539
  %v580 = vunpack.c.l.b16 %v540
  %v581 = vunpack.c.l.b16 %v541
  %v582 = vunpack.c.l.b16 %v542
  %v583 = vunpack.c.l.b16 %v543
  %v584 = vunpack.c.l.b16 %v544
  %v585 = vunpack.c.l.b16 %v545
  %v586 = vunpack.c.l.b16 %v546
  %v587 = vunpack.c.l.b16 %v547
  %v588 = vunpack.c.l.b16 %v548
  %v589 = vunpack.c.l.b16 %v549
  %v590 = vunpack.c.l.b16 %v550
  %v591 = vunpack.c.l.b16 %v551
  %v592 = vunpack.c.l.b16 %v552
  %v593 = vunpack.c.l.b16 %v553
  %v594 = vpack.c.b16 %v579, %v578
  %v595 = vpack.c.b16 %v581, %v580
  %v596 = vpack.c.b16 %v583, %v582
  %v597 = vpack.c.b16 %v585, %v584
  %v598 = vpack.c.b16 %v587, %v586
  %v599 = vpack.c.b16 %v589, %v588
  %v600 = vpack.c.b16 %v591, %v590
  %v601 = vpack.c.b16 %v593, %v592
  %610 = vmatprep.subr.bf16.mxu0 0
  %611 = vmatpush1.bf16.msra.mxu0 %v561
  %612 = vmatprep.subr.bf16.mxu0 0
  %613 = vmatpush1.bf16.msra.mxu0 %v560
  %614 = vmatprep.subr.bf16.mxu0 0
  %615 = vmatpush1.bf16.msra.mxu0 %v559
  %616 = vmatprep.subr.bf16.mxu0 0
  %617 = vmatpush1.bf16.msra.mxu0 %v558
  %618 = vmatprep.subr.bf16.mxu0 0
  %619 = vmatpush1.bf16.msra.mxu0 %v557
  %620 = vmatprep.subr.bf16.mxu0 0
  %621 = vmatpush1.bf16.msra.mxu0 %v556
  %622 = vmatprep.subr.bf16.mxu0 0
  %623 = vmatpush1.bf16.msra.mxu0 %v555
  %624 = vmatprep.subr.bf16.mxu0 0
  %625 = vmatpush1.bf16.msra.mxu0 %v554
  %626 = vmatprep.subr.bf16.mxu0 0
  %627 = vmatpush2.bf16.msra.mxu0 0
  %628 = vmatprep.subr.bf16.mxu0 0
  %629 = vmatpush2.bf16.msra.mxu0 0
  %630 = vmatprep.subr.bf16.mxu0 0
  %631 = vmatpush2.bf16.msra.mxu0 0
  %632 = vmatprep.subr.bf16.mxu0 0
  %633 = vmatpush2.bf16.msra.mxu0 0
  %634 = vmatprep.subr.bf16.mxu0 0
  %635 = vmatpush2.bf16.msra.mxu0 0
  %636 = vmatprep.subr.bf16.mxu0 0
  %637 = vmatpush2.bf16.msra.mxu0 0
  %638 = vmatprep.subr.bf16.mxu0 0
  %639 = vmatpush2.bf16.msra.mxu0 0
  %640 = vmatprep.subr.bf16.mxu0 0
  %641 = vmatpush2.bf16.msra.mxu0 0
  %642 = vmatprep.mubr.bf16.mxu0 0
  %643 = vmatmul.mubr.bf16.gmra.mxu0 %v594
  %v644 = vpop.f32.mrf.mxu0
  %v645 = vadd.f32 %v522, %v644
  %v646 = vpop.f32.mrf.mxu0
  %v647 = vpop.f32.mrf.mxu0
  %v648 = vadd.f32 %v523, %v647
  %v649 = vpop.f32.mrf.mxu0
  %650 = vmatprep.mubr.bf16.mxu0 0
  %651 = vmatmul.mubr.bf16.gmra.mxu0 %v595
  %v652 = vpop.f32.mrf.mxu0
  %v653 = vadd.f32 %v524, %v652
  %v654 = vpop.f32.mrf.mxu0
  %v655 = vpop.f32.mrf.mxu0
  %v656 = vadd.f32 %v525, %v655
  %v657 = vpop.f32.mrf.mxu0
  %658 = vmatprep.mubr.bf16.mxu0 0
  %659 = vmatmul.mubr.bf16.gmra.mxu0 %v596
  %v660 = vpop.f32.mrf.mxu0
  %v661 = vadd.f32 %v526, %v660
  %v662 = vpop.f32.mrf.mxu0
  %v663 = vpop.f32.mrf.mxu0
  %v664 = vadd.f32 %v527, %v663
  %v665 = vpop.f32.mrf.mxu0
  %666 = vmatprep.mubr.bf16.mxu0 0
  %667 = vmatmul.mubr.bf16.gmra.mxu0 %v597
  %v668 = vpop.f32.mrf.mxu0
  %v669 = vadd.f32 %v528, %v668
  %v670 = vpop.f32.mrf.mxu0
  %v671 = vpop.f32.mrf.mxu0
  %v672 = vadd.f32 %v529, %v671
  %v673 = vpop.f32.mrf.mxu0
  %674 = vmatprep.mubr.bf16.mxu0 0
  %675 = vmatmul.mubr.bf16.gmra.mxu0 %v598
  %v676 = vpop.f32.mrf.mxu0
  %v677 = vadd.f32 %v530, %v676
  %v678 = vpop.f32.mrf.mxu0
  %v679 = vpop.f32.mrf.mxu0
  %v680 = vadd.f32 %v531, %v679
  %v681 = vpop.f32.mrf.mxu0
  %682 = vmatprep.mubr.bf16.mxu0 0
  %683 = vmatmul.mubr.bf16.gmra.mxu0 %v599
  %v684 = vpop.f32.mrf.mxu0
  %v685 = vadd.f32 %v532, %v684
  %v686 = vpop.f32.mrf.mxu0
  %v687 = vpop.f32.mrf.mxu0
  %v688 = vadd.f32 %v533, %v687
  %v689 = vpop.f32.mrf.mxu0
  %690 = vmatprep.mubr.bf16.mxu0 0
  %691 = vmatmul.mubr.bf16.gmra.mxu0 %v600
  %v692 = vpop.f32.mrf.mxu0
  %v693 = vadd.f32 %v534, %v692
  %v694 = vpop.f32.mrf.mxu0
  %v695 = vpop.f32.mrf.mxu0
  %v696 = vadd.f32 %v535, %v695
  %v697 = vpop.f32.mrf.mxu0
  %698 = vmatprep.mubr.bf16.mxu0 0
  %699 = vmatmul.mubr.bf16.gmra.mxu0 %v601
  %v700 = vpop.f32.mrf.mxu0
  %v701 = vadd.f32 %v536, %v700
  %v702 = vpop.f32.mrf.mxu0
  %v703 = vpop.f32.mrf.mxu0
  %v704 = vadd.f32 %v537, %v703
  %v705 = vpop.f32.mrf.mxu0
  %706 = vdwg.mxu0
  %v707 = vpack.c.bf16 %v648, %v645
  %v708 = vpack.c.bf16 %v656, %v653
  %v709 = vpack.c.bf16 %v664, %v661
  %v710 = vpack.c.bf16 %v672, %v669
  %v711 = vpack.c.bf16 %v680, %v677
  %v712 = vpack.c.bf16 %v688, %v685
  %v713 = vpack.c.bf16 %v696, %v693
  %v714 = vpack.c.bf16 %v704, %v701
  %715 = vmatprep.subr.bf16.mxu0 0
  %716 = vmatpush1.bf16.msra.mxu0 %v714
  %717 = vmatprep.subr.bf16.mxu0 0
  %718 = vmatpush1.bf16.msra.mxu0 %v713
  %719 = vmatprep.subr.bf16.mxu0 0
  %720 = vmatpush1.bf16.msra.mxu0 %v712
  %721 = vmatprep.subr.bf16.mxu0 0
  %722 = vmatpush1.bf16.msra.mxu0 %v711
  %723 = vmatprep.subr.bf16.mxu0 0
  %724 = vmatpush1.bf16.msra.mxu0 %v710
  %725 = vmatprep.subr.bf16.mxu0 0
  %726 = vmatpush1.bf16.msra.mxu0 %v709
  %727 = vmatprep.subr.bf16.mxu0 0
  %728 = vmatpush1.bf16.msra.mxu0 %v708
  %729 = vmatprep.subr.bf16.mxu0 0
  %730 = vmatpush1.bf16.msra.mxu0 %v707
  %731 = vmatprep.subr.bf16.mxu0 0
  %732 = vmatpush2.bf16.msra.mxu0 0
  %733 = vmatprep.subr.bf16.mxu0 0
  %734 = vmatpush2.bf16.msra.mxu0 0
  %735 = vmatprep.subr.bf16.mxu0 0
  %736 = vmatpush2.bf16.msra.mxu0 0
  %737 = vmatprep.subr.bf16.mxu0 0
  %738 = vmatpush2.bf16.msra.mxu0 0
  %739 = vmatprep.subr.bf16.mxu0 0
  %740 = vmatpush2.bf16.msra.mxu0 0
  %741 = vmatprep.subr.bf16.mxu0 0
  %742 = vmatpush2.bf16.msra.mxu0 0
  %743 = vmatprep.subr.bf16.mxu0 0
  %744 = vmatpush2.bf16.msra.mxu0 0
  %745 = vmatprep.subr.bf16.mxu0 0
  %746 = vmatpush2.bf16.msra.mxu0 0
  %747 = vmatprep.mubr.bf16.mxu0 0
  %748 = vmatmul.mubr.bf16.gmra.mxu0 %v594
  %v749 = vpop.f32.mrf.mxu0
  %v750 = vadd.f32 %v522, %v749
  %v751 = vpop.f32.mrf.mxu0
  %v752 = vpop.f32.mrf.mxu0
  %v753 = vadd.f32 %v523, %v752
  %v754 = vpop.f32.mrf.mxu0
  %755 = vmatprep.mubr.bf16.mxu0 0
  %756 = vmatmul.mubr.bf16.gmra.mxu0 %v595
  %v757 = vpop.f32.mrf.mxu0
  %v758 = vadd.f32 %v524, %v757
  %v759 = vpop.f32.mrf.mxu0
  %v760 = vpop.f32.mrf.mxu0
  %v761 = vadd.f32 %v525, %v760
  %v762 = vpop.f32.mrf.mxu0
  %763 = vmatprep.mubr.bf16.mxu0 0
  %764 = vmatmul.mubr.bf16.gmra.mxu0 %v596
  %v765 = vpop.f32.mrf.mxu0
  %v766 = vadd.f32 %v526, %v765
  %v767 = vpop.f32.mrf.mxu0
  %v768 = vpop.f32.mrf.mxu0
  %v769 = vadd.f32 %v527, %v768
  %v770 = vpop.f32.mrf.mxu0
  %771 = vmatprep.mubr.bf16.mxu0 0
  %772 = vmatmul.mubr.bf16.gmra.mxu0 %v597
  %v773 = vpop.f32.mrf.mxu0
  %v774 = vadd.f32 %v528, %v773
  %v775 = vpop.f32.mrf.mxu0
  %v776 = vpop.f32.mrf.mxu0
  %v777 = vadd.f32 %v529, %v776
  %v778 = vpop.f32.mrf.mxu0
  %779 = vmatprep.mubr.bf16.mxu0 0
  %780 = vmatmul.mubr.bf16.gmra.mxu0 %v598
  %v781 = vpop.f32.mrf.mxu0
  %v782 = vadd.f32 %v530, %v781
  %v783 = vpop.f32.mrf.mxu0
  %v784 = vpop.f32.mrf.mxu0
  %v785 = vadd.f32 %v531, %v784
  %v786 = vpop.f32.mrf.mxu0
  %787 = vmatprep.mubr.bf16.mxu0 0
  %788 = vmatmul.mubr.bf16.gmra.mxu0 %v599
  %v789 = vpop.f32.mrf.mxu0
  %v790 = vadd.f32 %v532, %v789
  %v791 = vpop.f32.mrf.mxu0
  %v792 = vpop.f32.mrf.mxu0
  %v793 = vadd.f32 %v533, %v792
  %v794 = vpop.f32.mrf.mxu0
  %795 = vmatprep.mubr.bf16.mxu0 0
  %796 = vmatmul.mubr.bf16.gmra.mxu0 %v600
  %v797 = vpop.f32.mrf.mxu0
  %v798 = vadd.f32 %v534, %v797
  %v799 = vpop.f32.mrf.mxu0
  %v800 = vpop.f32.mrf.mxu0
  %v801 = vadd.f32 %v535, %v800
  %v802 = vpop.f32.mrf.mxu0
  %803 = vmatprep.mubr.bf16.mxu0 0
  %804 = vmatmul.mubr.bf16.gmra.mxu0 %v601
  %v805 = vpop.f32.mrf.mxu0
  %v806 = vadd.f32 %v536, %v805
  %v807 = vpop.f32.mrf.mxu0
  %v808 = vpop.f32.mrf.mxu0
  %v809 = vadd.f32 %v537, %v808
  %v810 = vpop.f32.mrf.mxu0
  %811 = vdwg.mxu0
  %v812 = vpack.c.bf16 %v753, %v750
  %v813 = vpack.c.bf16 %v761, %v758
  %v814 = vpack.c.bf16 %v769, %v766
  %v815 = vpack.c.bf16 %v777, %v774
  %v816 = vpack.c.bf16 %v785, %v782
  %v817 = vpack.c.bf16 %v793, %v790
  %v818 = vpack.c.bf16 %v801, %v798
  %v819 = vpack.c.bf16 %v809, %v806
  %820 = vmatprep.subr.bf16.mxu0 0
  %821 = vmatpush1.bf16.msra.mxu0 %v819
  %822 = vmatprep.subr.bf16.mxu0 0
  %823 = vmatpush1.bf16.msra.mxu0 %v818
  %824 = vmatprep.subr.bf16.mxu0 0
  %825 = vmatpush1.bf16.msra.mxu0 %v817
  %826 = vmatprep.subr.bf16.mxu0 0
  %827 = vmatpush1.bf16.msra.mxu0 %v816
  %828 = vmatprep.subr.bf16.mxu0 0
  %829 = vmatpush1.bf16.msra.mxu0 %v815
  %830 = vmatprep.subr.bf16.mxu0 0
  %831 = vmatpush1.bf16.msra.mxu0 %v814
  %832 = vmatprep.subr.bf16.mxu0 0
  %833 = vmatpush1.bf16.msra.mxu0 %v813
  %834 = vmatprep.subr.bf16.mxu0 0
  %835 = vmatpush1.bf16.msra.mxu0 %v812
  %836 = vmatprep.subr.bf16.mxu0 0
  %837 = vmatpush2.bf16.msra.mxu0 0
  %838 = vmatprep.subr.bf16.mxu0 0
  %839 = vmatpush2.bf16.msra.mxu0 0
  %840 = vmatprep.subr.bf16.mxu0 0
  %841 = vmatpush2.bf16.msra.mxu0 0
  %842 = vmatprep.subr.bf16.mxu0 0
  %843 = vmatpush2.bf16.msra.mxu0 0
  %844 = vmatprep.subr.bf16.mxu0 0
  %845 = vmatpush2.bf16.msra.mxu0 0
  %846 = vmatprep.subr.bf16.mxu0 0
  %847 = vmatpush2.bf16.msra.mxu0 0
  %848 = vmatprep.subr.bf16.mxu0 0
  %849 = vmatpush2.bf16.msra.mxu0 0
  %850 = vmatprep.subr.bf16.mxu0 0
  %851 = vmatpush2.bf16.msra.mxu0 0
  %852 = vmatprep.mubr.bf16.mxu0 0
  %853 = vmatmul.mubr.bf16.gmra.mxu0 %v594
  %v854 = vpop.f32.mrf.mxu0
  %v855 = vadd.f32 %v522, %v854
  %v856 = vpop.f32.mrf.mxu0
  %v857 = vpop.f32.mrf.mxu0
  %v858 = vadd.f32 %v523, %v857
  %v859 = vpop.f32.mrf.mxu0
  %860 = vmatprep.mubr.bf16.mxu0 0
  %861 = vmatmul.mubr.bf16.gmra.mxu0 %v595
  %v862 = vpop.f32.mrf.mxu0
  %v863 = vadd.f32 %v524, %v862
  %v864 = vpop.f32.mrf.mxu0
  %v865 = vpop.f32.mrf.mxu0
  %v866 = vadd.f32 %v525, %v865
  %v867 = vpop.f32.mrf.mxu0
  %868 = vmatprep.mubr.bf16.mxu0 0
  %869 = vmatmul.mubr.bf16.gmra.mxu0 %v596
  %v870 = vpop.f32.mrf.mxu0
  %v871 = vadd.f32 %v526, %v870
  %v872 = vpop.f32.mrf.mxu0
  %v873 = vpop.f32.mrf.mxu0
  %v874 = vadd.f32 %v527, %v873
  %v875 = vpop.f32.mrf.mxu0
  %876 = vmatprep.mubr.bf16.mxu0 0
  %877 = vmatmul.mubr.bf16.gmra.mxu0 %v597
  %v878 = vpop.f32.mrf.mxu0
  %v879 = vadd.f32 %v528, %v878
  %v880 = vpop.f32.mrf.mxu0
  %v881 = vpop.f32.mrf.mxu0
  %v882 = vadd.f32 %v529, %v881
  %v883 = vpop.f32.mrf.mxu0
  %884 = vmatprep.mubr.bf16.mxu0 0
  %885 = vmatmul.mubr.bf16.gmra.mxu0 %v598
  %v886 = vpop.f32.mrf.mxu0
  %v887 = vadd.f32 %v530, %v886
  %v888 = vpop.f32.mrf.mxu0
  %v889 = vpop.f32.mrf.mxu0
  %v890 = vadd.f32 %v531, %v889
  %v891 = vpop.f32.mrf.mxu0
  %892 = vmatprep.mubr.bf16.mxu0 0
  %893 = vmatmul.mubr.bf16.gmra.mxu0 %v599
  %v894 = vpop.f32.mrf.mxu0
  %v895 = vadd.f32 %v532, %v894
  %v896 = vpop.f32.mrf.mxu0
  %v897 = vpop.f32.mrf.mxu0
  %v898 = vadd.f32 %v533, %v897
  %v899 = vpop.f32.mrf.mxu0
  %900 = vmatprep.mubr.bf16.mxu0 0
  %901 = vmatmul.mubr.bf16.gmra.mxu0 %v600
  %v902 = vpop.f32.mrf.mxu0
  %v903 = vadd.f32 %v534, %v902
  %v904 = vpop.f32.mrf.mxu0
  %v905 = vpop.f32.mrf.mxu0
  %v906 = vadd.f32 %v535, %v905
  %v907 = vpop.f32.mrf.mxu0
  %908 = vmatprep.mubr.bf16.mxu0 0
  %909 = vmatmul.mubr.bf16.gmra.mxu0 %v601
  %v910 = vpop.f32.mrf.mxu0
  %v911 = vadd.f32 %v536, %v910
  %v912 = vpop.f32.mrf.mxu0
  %v913 = vpop.f32.mrf.mxu0
  %v914 = vadd.f32 %v537, %v913
  %v915 = vpop.f32.mrf.mxu0
  %916 = vdwg.mxu0
  %v917 = vpack.c.bf16 %v858, %v855
  %v918 = vpack.c.bf16 %v866, %v863
  %v919 = vpack.c.bf16 %v874, %v871
  %v920 = vpack.c.bf16 %v882, %v879
  %v921 = vpack.c.bf16 %v890, %v887
  %v922 = vpack.c.bf16 %v898, %v895
  %v923 = vpack.c.bf16 %v906, %v903
  %v924 = vpack.c.bf16 %v914, %v911
  %925 = vmatprep.subr.bf16.mxu0 0
  %926 = vmatpush1.bf16.msra.mxu0 %v924
  %927 = vmatprep.subr.bf16.mxu0 0
  %928 = vmatpush1.bf16.msra.mxu0 %v923
  %929 = vmatprep.subr.bf16.mxu0 0
  %930 = vmatpush1.bf16.msra.mxu0 %v922
  %931 = vmatprep.subr.bf16.mxu0 0
  %932 = vmatpush1.bf16.msra.mxu0 %v921
  %933 = vmatprep.subr.bf16.mxu0 0
  %934 = vmatpush1.bf16.msra.mxu0 %v920
  %935 = vmatprep.subr.bf16.mxu0 0
  %936 = vmatpush1.bf16.msra.mxu0 %v919
  %937 = vmatprep.subr.bf16.mxu0 0
  %938 = vmatpush1.bf16.msra.mxu0 %v918
  %939 = vmatprep.subr.bf16.mxu0 0
  %940 = vmatpush1.bf16.msra.mxu0 %v917
  %941 = vmatprep.subr.bf16.mxu0 0
  %942 = vmatpush2.bf16.msra.mxu0 0
  %943 = vmatprep.subr.bf16.mxu0 0
  %944 = vmatpush2.bf16.msra.mxu0 0
  %945 = vmatprep.subr.bf16.mxu0 0
  %946 = vmatpush2.bf16.msra.mxu0 0
  %947 = vmatprep.subr.bf16.mxu0 0
  %948 = vmatpush2.bf16.msra.mxu0 0
  %949 = vmatprep.subr.bf16.mxu0 0
  %950 = vmatpush2.bf16.msra.mxu0 0
  %951 = vmatprep.subr.bf16.mxu0 0
  %952 = vmatpush2.bf16.msra.mxu0 0
  %953 = vmatprep.subr.bf16.mxu0 0
  %954 = vmatpush2.bf16.msra.mxu0 0
  %955 = vmatprep.subr.bf16.mxu0 0
  %956 = vmatpush2.bf16.msra.mxu0 0
  %957 = vmatprep.mubr.bf16.mxu0 0
  %958 = vmatmul.mubr.bf16.gmra.mxu0 %v594
  %v959 = vpop.f32.mrf.mxu0
  %v960 = vadd.f32 %v522, %v959
  %v961 = vpop.f32.mrf.mxu0
  %v962 = vpop.f32.mrf.mxu0
  %v963 = vadd.f32 %v523, %v962
  %v964 = vpop.f32.mrf.mxu0
  %965 = vmatprep.mubr.bf16.mxu0 0
  %966 = vmatmul.mubr.bf16.gmra.mxu0 %v595
  %v967 = vpop.f32.mrf.mxu0
  %v968 = vadd.f32 %v524, %v967
  %v969 = vpop.f32.mrf.mxu0
  %v970 = vpop.f32.mrf.mxu0
  %v971 = vadd.f32 %v525, %v970
  %v972 = vpop.f32.mrf.mxu0
  %973 = vmatprep.mubr.bf16.mxu0 0
  %974 = vmatmul.mubr.bf16.gmra.mxu0 %v596
  %v975 = vpop.f32.mrf.mxu0
  %v976 = vadd.f32 %v526, %v975
  %v977 = vpop.f32.mrf.mxu0
  %v978 = vpop.f32.mrf.mxu0
  %v979 = vadd.f32 %v527, %v978
  %v980 = vpop.f32.mrf.mxu0
  %981 = vmatprep.mubr.bf16.mxu0 0
  %982 = vmatmul.mubr.bf16.gmra.mxu0 %v597
  %v983 = vpop.f32.mrf.mxu0
  %v984 = vadd.f32 %v528, %v983
  %v985 = vpop.f32.mrf.mxu0
  %v986 = vpop.f32.mrf.mxu0
  %v987 = vadd.f32 %v529, %v986
  %v988 = vpop.f32.mrf.mxu0
  %989 = vmatprep.mubr.bf16.mxu0 0
  %990 = vmatmul.mubr.bf16.gmra.mxu0 %v598
  %v991 = vpop.f32.mrf.mxu0
  %v992 = vadd.f32 %v530, %v991
  %v993 = vpop.f32.mrf.mxu0
  %v994 = vpop.f32.mrf.mxu0
  %v995 = vadd.f32 %v531, %v994
  %v996 = vpop.f32.mrf.mxu0
  %997 = vmatprep.mubr.bf16.mxu0 0
  %998 = vmatmul.mubr.bf16.gmra.mxu0 %v599
  %v999 = vpop.f32.mrf.mxu0
  %v1000 = vadd.f32 %v532, %v999
  %v1001 = vpop.f32.mrf.mxu0
  %v1002 = vpop.f32.mrf.mxu0
  %v1003 = vadd.f32 %v533, %v1002
  %v1004 = vpop.f32.mrf.mxu0
  %1005 = vmatprep.mubr.bf16.mxu0 0
  %1006 = vmatmul.mubr.bf16.gmra.mxu0 %v600
  %v1007 = vpop.f32.mrf.mxu0
  %v1008 = vadd.f32 %v534, %v1007
  %v1009 = vpop.f32.mrf.mxu0
  %v1010 = vpop.f32.mrf.mxu0
  %v1011 = vadd.f32 %v535, %v1010
  %v1012 = vpop.f32.mrf.mxu0
  %1013 = vmatprep.mubr.bf16.mxu0 0
  %1014 = vmatmul.mubr.bf16.gmra.mxu0 %v601
  %v1015 = vpop.f32.mrf.mxu0
  %v1016 = vadd.f32 %v536, %v1015
  %v1017 = vpop.f32.mrf.mxu0
  %v1018 = vpop.f32.mrf.mxu0
  %v1019 = vadd.f32 %v537, %v1018
  %v1020 = vpop.f32.mrf.mxu0
  %1021 = vdwg.mxu0
  %v1022 = vmul.f32 %v960, 0.5
  %v1023 = vmul.f32 %v963, 0.5
  %v1024 = vmul.f32 %v968, 0.5
  %v1025 = vmul.f32 %v971, 0.5
  %v1026 = vmul.f32 %v976, 0.5
  %v1027 = vmul.f32 %v979, 0.5
  %v1028 = vmul.f32 %v984, 0.5
  %v1029 = vmul.f32 %v987, 0.5
  %v1030 = vmul.f32 %v992, 0.5
  %v1031 = vmul.f32 %v995, 0.5
  %v1032 = vmul.f32 %v1000, 0.5
  %v1033 = vmul.f32 %v1003, 0.5
  %v1034 = vmul.f32 %v1008, 0.5
  %v1035 = vmul.f32 %v1011, 0.5
  %v1036 = vmul.f32 %v1016, 0.5
  %v1037 = vmul.f32 %v1019, 0.5
  %v1038 = vmul.f32 %v960, 0.70710677
  %v1039 = vmul.f32 %v963, 0.70710677
  %v1040 = vmul.f32 %v968, 0.70710677
  %v1041 = vmul.f32 %v971, 0.70710677
  %v1042 = vmul.f32 %v976, 0.70710677
  %v1043 = vmul.f32 %v979, 0.70710677
  %v1044 = vmul.f32 %v984, 0.70710677
  %v1045 = vmul.f32 %v987, 0.70710677
  %v1046 = vmul.f32 %v992, 0.70710677
  %v1047 = vmul.f32 %v995, 0.70710677
  %v1048 = vmul.f32 %v1000, 0.70710677
  %v1049 = vmul.f32 %v1003, 0.70710677
  %v1050 = vmul.f32 %v1008, 0.70710677
  %v1051 = vmul.f32 %v1011, 0.70710677
  %v1052 = vmul.f32 %v1016, 0.70710677
  %v1053 = vmul.f32 %v1019, 0.70710677
  %v1054 = verf.f32.pop %v1038
  %v1055 = verf.f32.pop %v1039
  %v1056 = verf.f32.pop %v1040
  %v1057 = verf.f32.pop %v1041
  %v1058 = verf.f32.pop %v1042
  %v1059 = verf.f32.pop %v1043
  %v1060 = verf.f32.pop %v1044
  %v1061 = verf.f32.pop %v1045
  %v1062 = verf.f32.pop %v1046
  %v1063 = verf.f32.pop %v1047
  %v1064 = verf.f32.pop %v1048
  %v1065 = verf.f32.pop %v1049
  %v1066 = verf.f32.pop %v1050
  %v1067 = verf.f32.pop %v1051
  %v1068 = verf.f32.pop %v1052
  %v1069 = verf.f32.pop %v1053
  %v1070 = vadd.f32 %v1054, 1.0
  %v1071 = vadd.f32 %v1055, 1.0
  %v1072 = vadd.f32 %v1056, 1.0
  %v1073 = vadd.f32 %v1057, 1.0
  %v1074 = vadd.f32 %v1058, 1.0
  %v1075 = vadd.f32 %v1059, 1.0
  %v1076 = vadd.f32 %v1060, 1.0
  %v1077 = vadd.f32 %v1061, 1.0
  %v1078 = vadd.f32 %v1062, 1.0
  %v1079 = vadd.f32 %v1063, 1.0
  %v1080 = vadd.f32 %v1064, 1.0
  %v1081 = vadd.f32 %v1065, 1.0
  %v1082 = vadd.f32 %v1066, 1.0
  %v1083 = vadd.f32 %v1067, 1.0
  %v1084 = vadd.f32 %v1068, 1.0
  %v1085 = vadd.f32 %v1069, 1.0
  %v1086 = vmul.f32 %v1022, %v1070
  %v1087 = vmul.f32 %v1023, %v1071
  %v1088 = vmul.f32 %v1024, %v1072
  %v1089 = vmul.f32 %v1025, %v1073
  %v1090 = vmul.f32 %v1026, %v1074
  %v1091 = vmul.f32 %v1027, %v1075
  %v1092 = vmul.f32 %v1028, %v1076
  %v1093 = vmul.f32 %v1029, %v1077
  %v1094 = vmul.f32 %v1030, %v1078
  %v1095 = vmul.f32 %v1031, %v1079
  %v1096 = vmul.f32 %v1032, %v1080
  %v1097 = vmul.f32 %v1033, %v1081
  %v1098 = vmul.f32 %v1034, %v1082
  %v1099 = vmul.f32 %v1035, %v1083
  %v1100 = vmul.f32 %v1036, %v1084
  %v1101 = vmul.f32 %v1037, %v1085
  %v1102 = vsel %vm188, %v1086, 0.0
  %1103 = vadd.xlane.f32.xlu0 %v1102
  %v1104 = vpop.xlane.xlu0 %1103
  %v1105 = vsel %vm188, %v1087, 0.0
  %1106 = vadd.xlane.f32.xlu0 %v1105
  %v1107 = vpop.xlane.xlu0 %1106
  %v1108 = vsel %vm188, %v1088, 0.0
  %1109 = vadd.xlane.f32.xlu0 %v1108
  %v1110 = vpop.xlane.xlu0 %1109
  %v1111 = vsel %vm188, %v1089, 0.0
  %1112 = vadd.xlane.f32.xlu0 %v1111
  %v1113 = vpop.xlane.xlu0 %1112
  %v1114 = vsel %vm188, %v1090, 0.0
  %1115 = vadd.xlane.f32.xlu0 %v1114
  %v1116 = vpop.xlane.xlu0 %1115
  %v1117 = vsel %vm188, %v1091, 0.0
  %1118 = vadd.xlane.f32.xlu0 %v1117
  %v1119 = vpop.xlane.xlu0 %1118
  %v1120 = vsel %vm188, %v1092, 0.0
  %1121 = vadd.xlane.f32.xlu0 %v1120
  %v1122 = vpop.xlane.xlu0 %1121
  %v1123 = vsel %vm188, %v1093, 0.0
  %1124 = vadd.xlane.f32.xlu0 %v1123
  %v1125 = vpop.xlane.xlu0 %1124
  %v1126 = vsel %vm188, %v1094, 0.0
  %1127 = vadd.xlane.f32.xlu0 %v1126
  %v1128 = vpop.xlane.xlu0 %1127
  %v1129 = vsel %vm188, %v1095, 0.0
  %1130 = vadd.xlane.f32.xlu0 %v1129
  %v1131 = vpop.xlane.xlu0 %1130
  %v1132 = vsel %vm188, %v1096, 0.0
  %1133 = vadd.xlane.f32.xlu0 %v1132
  %v1134 = vpop.xlane.xlu0 %1133
  %v1135 = vsel %vm188, %v1097, 0.0
  %1136 = vadd.xlane.f32.xlu0 %v1135
  %v1137 = vpop.xlane.xlu0 %1136
  %v1138 = vsel %vm188, %v1098, 0.0
  %1139 = vadd.xlane.f32.xlu0 %v1138
  %v1140 = vpop.xlane.xlu0 %1139
  %v1141 = vsel %vm188, %v1099, 0.0
  %1142 = vadd.xlane.f32.xlu0 %v1141
  %v1143 = vpop.xlane.xlu0 %1142
  %v1144 = vsel %vm188, %v1100, 0.0
  %1145 = vadd.xlane.f32.xlu0 %v1144
  %v1146 = vpop.xlane.xlu0 %1145
  %v1147 = vsel %vm188, %v1101, 0.0
  %1148 = vadd.xlane.f32.xlu0 %v1147
  %v1149 = vpop.xlane.xlu0 %1148
  %v1150 = vmul.f32 %v1104, %v237
  %v1151 = vmul.f32 %v1107, %v237
  %v1152 = vmul.f32 %v1110, %v237
  %v1153 = vmul.f32 %v1113, %v237
  %v1154 = vmul.f32 %v1116, %v237
  %v1155 = vmul.f32 %v1119, %v237
  %v1156 = vmul.f32 %v1122, %v237
  %v1157 = vmul.f32 %v1125, %v237
  %v1158 = vmul.f32 %v1128, %v237
  %v1159 = vmul.f32 %v1131, %v237
  %v1160 = vmul.f32 %v1134, %v237
  %v1161 = vmul.f32 %v1137, %v237
  %v1162 = vmul.f32 %v1140, %v237
  %v1163 = vmul.f32 %v1143, %v237
  %v1164 = vmul.f32 %v1146, %v237
  %v1165 = vmul.f32 %v1149, %v237
  %v1166 = vsub.f32 %v1086, %v1150
  %v1167 = vsub.f32 %v1087, %v1151
  %v1168 = vsub.f32 %v1088, %v1152
  %v1169 = vsub.f32 %v1089, %v1153
  %v1170 = vsub.f32 %v1090, %v1154
  %v1171 = vsub.f32 %v1091, %v1155
  %v1172 = vsub.f32 %v1092, %v1156
  %v1173 = vsub.f32 %v1093, %v1157
  %v1174 = vsub.f32 %v1094, %v1158
  %v1175 = vsub.f32 %v1095, %v1159
  %v1176 = vsub.f32 %v1096, %v1160
  %v1177 = vsub.f32 %v1097, %v1161
  %v1178 = vsub.f32 %v1098, %v1162
  %v1179 = vsub.f32 %v1099, %v1163
  %v1180 = vsub.f32 %v1100, %v1164
  %v1181 = vsub.f32 %v1101, %v1165
  %v1182 = vmul.f32 %v1166, %v1166
  %v1183 = vmul.f32 %v1167, %v1167
  %v1184 = vmul.f32 %v1168, %v1168
  %v1185 = vmul.f32 %v1169, %v1169
  %v1186 = vmul.f32 %v1170, %v1170
  %v1187 = vmul.f32 %v1171, %v1171
  %v1188 = vmul.f32 %v1172, %v1172
  %v1189 = vmul.f32 %v1173, %v1173
  %v1190 = vmul.f32 %v1174, %v1174
  %v1191 = vmul.f32 %v1175, %v1175
  %v1192 = vmul.f32 %v1176, %v1176
  %v1193 = vmul.f32 %v1177, %v1177
  %v1194 = vmul.f32 %v1178, %v1178
  %v1195 = vmul.f32 %v1179, %v1179
  %v1196 = vmul.f32 %v1180, %v1180
  %v1197 = vmul.f32 %v1181, %v1181
  %v1198 = vsel %vm188, %v1182, 0.0
  %1199 = vadd.xlane.f32.xlu0 %v1198
  %v1200 = vpop.xlane.xlu0 %1199
  %v1201 = vsel %vm188, %v1183, 0.0
  %1202 = vadd.xlane.f32.xlu0 %v1201
  %v1203 = vpop.xlane.xlu0 %1202
  %v1204 = vsel %vm188, %v1184, 0.0
  %1205 = vadd.xlane.f32.xlu0 %v1204
  %v1206 = vpop.xlane.xlu0 %1205
  %v1207 = vsel %vm188, %v1185, 0.0
  %1208 = vadd.xlane.f32.xlu0 %v1207
  %v1209 = vpop.xlane.xlu0 %1208
  %v1210 = vsel %vm188, %v1186, 0.0
  %1211 = vadd.xlane.f32.xlu0 %v1210
  %v1212 = vpop.xlane.xlu0 %1211
  %v1213 = vsel %vm188, %v1187, 0.0
  %1214 = vadd.xlane.f32.xlu0 %v1213
  %v1215 = vpop.xlane.xlu0 %1214
  %v1216 = vsel %vm188, %v1188, 0.0
  %1217 = vadd.xlane.f32.xlu0 %v1216
  %v1218 = vpop.xlane.xlu0 %1217
  %v1219 = vsel %vm188, %v1189, 0.0
  %1220 = vadd.xlane.f32.xlu0 %v1219
  %v1221 = vpop.xlane.xlu0 %1220
  %v1222 = vsel %vm188, %v1190, 0.0
  %1223 = vadd.xlane.f32.xlu0 %v1222
  %v1224 = vpop.xlane.xlu0 %1223
  %v1225 = vsel %vm188, %v1191, 0.0
  %1226 = vadd.xlane.f32.xlu0 %v1225
  %v1227 = vpop.xlane.xlu0 %1226
  %v1228 = vsel %vm188, %v1192, 0.0
  %1229 = vadd.xlane.f32.xlu0 %v1228
  %v1230 = vpop.xlane.xlu0 %1229
  %v1231 = vsel %vm188, %v1193, 0.0
  %1232 = vadd.xlane.f32.xlu0 %v1231
  %v1233 = vpop.xlane.xlu0 %1232
  %v1234 = vsel %vm188, %v1194, 0.0
  %1235 = vadd.xlane.f32.xlu0 %v1234
  %v1236 = vpop.xlane.xlu0 %1235
  %v1237 = vsel %vm188, %v1195, 0.0
  %1238 = vadd.xlane.f32.xlu0 %v1237
  %v1239 = vpop.xlane.xlu0 %1238
  %v1240 = vsel %vm188, %v1196, 0.0
  %1241 = vadd.xlane.f32.xlu0 %v1240
  %v1242 = vpop.xlane.xlu0 %1241
  %v1243 = vsel %vm188, %v1197, 0.0
  %1244 = vadd.xlane.f32.xlu0 %v1243
  %v1245 = vpop.xlane.xlu0 %1244
  %v1246 = vmul.f32 %v1200, %v237
  %v1247 = vmul.f32 %v1203, %v237
  %v1248 = vmul.f32 %v1206, %v237
  %v1249 = vmul.f32 %v1209, %v237
  %v1250 = vmul.f32 %v1212, %v237
  %v1251 = vmul.f32 %v1215, %v237
  %v1252 = vmul.f32 %v1218, %v237
  %v1253 = vmul.f32 %v1221, %v237
  %v1254 = vmul.f32 %v1224, %v237
  %v1255 = vmul.f32 %v1227, %v237
  %v1256 = vmul.f32 %v1230, %v237
  %v1257 = vmul.f32 %v1233, %v237
  %v1258 = vmul.f32 %v1236, %v237
  %v1259 = vmul.f32 %v1239, %v237
  %v1260 = vmul.f32 %v1242, %v237
  %v1261 = vmul.f32 %v1245, %v237
  %v1262 = vadd.f32 %v1246, 1e-05
  %v1263 = vadd.f32 %v1247, 1e-05
  %v1264 = vadd.f32 %v1248, 1e-05
  %v1265 = vadd.f32 %v1249, 1e-05
  %v1266 = vadd.f32 %v1250, 1e-05
  %v1267 = vadd.f32 %v1251, 1e-05
  %v1268 = vadd.f32 %v1252, 1e-05
  %v1269 = vadd.f32 %v1253, 1e-05
  %v1270 = vadd.f32 %v1254, 1e-05
  %v1271 = vadd.f32 %v1255, 1e-05
  %v1272 = vadd.f32 %v1256, 1e-05
  %v1273 = vadd.f32 %v1257, 1e-05
  %v1274 = vadd.f32 %v1258, 1e-05
  %v1275 = vadd.f32 %v1259, 1e-05
  %v1276 = vadd.f32 %v1260, 1e-05
  %v1277 = vadd.f32 %v1261, 1e-05
  %v1278 = vrsqrt.pop %v1262
  %v1279 = vrsqrt.pop %v1263
  %v1280 = vrsqrt.pop %v1264
  %v1281 = vrsqrt.pop %v1265
  %v1282 = vrsqrt.pop %v1266
  %v1283 = vrsqrt.pop %v1267
  %v1284 = vrsqrt.pop %v1268
  %v1285 = vrsqrt.pop %v1269
  %v1286 = vrsqrt.pop %v1270
  %v1287 = vrsqrt.pop %v1271
  %v1288 = vrsqrt.pop %v1272
  %v1289 = vrsqrt.pop %v1273
  %v1290 = vrsqrt.pop %v1274
  %v1291 = vrsqrt.pop %v1275
  %v1292 = vrsqrt.pop %v1276
  %v1293 = vrsqrt.pop %v1277
  %v1294 = vmul.f32 %v1166, %v1278
  %v1295 = vmul.f32 %v1167, %v1279
  %v1296 = vmul.f32 %v1168, %v1280
  %v1297 = vmul.f32 %v1169, %v1281
  %v1298 = vmul.f32 %v1170, %v1282
  %v1299 = vmul.f32 %v1171, %v1283
  %v1300 = vmul.f32 %v1172, %v1284
  %v1301 = vmul.f32 %v1173, %v1285
  %v1302 = vmul.f32 %v1174, %v1286
  %v1303 = vmul.f32 %v1175, %v1287
  %v1304 = vmul.f32 %v1176, %v1288
  %v1305 = vmul.f32 %v1177, %v1289
  %v1306 = vmul.f32 %v1178, %v1290
  %v1307 = vmul.f32 %v1179, %v1291
  %v1308 = vmul.f32 %v1180, %v1292
  %v1309 = vmul.f32 %v1181, %v1293
  %v1310 = vmul.f32 %v1294, %v402
  %v1311 = vmul.f32 %v1295, %v402
  %v1312 = vmul.f32 %v1296, %v402
  %v1313 = vmul.f32 %v1297, %v402
  %v1314 = vmul.f32 %v1298, %v402
  %v1315 = vmul.f32 %v1299, %v402
  %v1316 = vmul.f32 %v1300, %v402
  %v1317 = vmul.f32 %v1301, %v402
  %v1318 = vmul.f32 %v1302, %v402
  %v1319 = vmul.f32 %v1303, %v402
  %v1320 = vmul.f32 %v1304, %v402
  %v1321 = vmul.f32 %v1305, %v402
  %v1322 = vmul.f32 %v1306, %v402
  %v1323 = vmul.f32 %v1307, %v402
  %v1324 = vmul.f32 %v1308, %v402
  %v1325 = vmul.f32 %v1309, %v402
  %v1326 = vadd.f32 %v1310, %v424
  %v1327 = vadd.f32 %v1311, %v424
  %v1328 = vadd.f32 %v1312, %v424
  %v1329 = vadd.f32 %v1313, %v424
  %v1330 = vadd.f32 %v1314, %v424
  %v1331 = vadd.f32 %v1315, %v424
  %v1332 = vadd.f32 %v1316, %v424
  %v1333 = vadd.f32 %v1317, %v424
  %v1334 = vadd.f32 %v1318, %v424
  %v1335 = vadd.f32 %v1319, %v424
  %v1336 = vadd.f32 %v1320, %v424
  %v1337 = vadd.f32 %v1321, %v424
  %v1338 = vadd.f32 %v1322, %v424
  %v1339 = vadd.f32 %v1323, %v424
  %v1340 = vadd.f32 %v1324, %v424
  %v1341 = vadd.f32 %v1325, %v424
  %v1342 = vmul.f32 %v1326, 0.1
  %v1343 = vmul.f32 %v1327, 0.1
  %v1344 = vmul.f32 %v1328, 0.1
  %v1345 = vmul.f32 %v1329, 0.1
  %v1346 = vmul.f32 %v1330, 0.1
  %v1347 = vmul.f32 %v1331, 0.1
  %v1348 = vmul.f32 %v1332, 0.1
  %v1349 = vmul.f32 %v1333, 0.1
  %v1350 = vmul.f32 %v1334, 0.1
  %v1351 = vmul.f32 %v1335, 0.1
  %v1352 = vmul.f32 %v1336, 0.1
  %v1353 = vmul.f32 %v1337, 0.1
  %v1354 = vmul.f32 %v1338, 0.1
  %v1355 = vmul.f32 %v1339, 0.1
  %v1356 = vmul.f32 %v1340, 0.1
  %v1357 = vmul.f32 %v1341, 0.1
  %v1358 = vpack.c.bf16 %v1327, %v1326
  %v1359 = vpack.c.bf16 %v1329, %v1328
  %v1360 = vpack.c.bf16 %v1331, %v1330
  %v1361 = vpack.c.bf16 %v1333, %v1332
  %v1362 = vpack.c.bf16 %v1335, %v1334
  %v1363 = vpack.c.bf16 %v1337, %v1336
  %v1364 = vpack.c.bf16 %v1339, %v1338
  %v1365 = vpack.c.bf16 %v1341, %v1340
  %1366 = vmatprep.subr.bf16.mxu0 0
  %1367 = vmatpush1.bf16.msra.mxu0 %v1365
  %1368 = vmatprep.subr.bf16.mxu0 0
  %1369 = vmatpush1.bf16.msra.mxu0 %v1364
  %1370 = vmatprep.subr.bf16.mxu0 0
  %1371 = vmatpush1.bf16.msra.mxu0 %v1363
  %1372 = vmatprep.subr.bf16.mxu0 0
  %1373 = vmatpush1.bf16.msra.mxu0 %v1362
  %1374 = vmatprep.subr.bf16.mxu0 0
  %1375 = vmatpush1.bf16.msra.mxu0 %v1361
  %1376 = vmatprep.subr.bf16.mxu0 0
  %1377 = vmatpush1.bf16.msra.mxu0 %v1360
  %1378 = vmatprep.subr.bf16.mxu0 0
  %1379 = vmatpush1.bf16.msra.mxu0 %v1359
  %1380 = vmatprep.subr.bf16.mxu0 0
  %1381 = vmatpush1.bf16.msra.mxu0 %v1358
  %1382 = vmatprep.subr.bf16.mxu0 0
  %1383 = vmatpush2.bf16.msra.mxu0 0
  %1384 = vmatprep.subr.bf16.mxu0 0
  %1385 = vmatpush2.bf16.msra.mxu0 0
  %1386 = vmatprep.subr.bf16.mxu0 0
  %1387 = vmatpush2.bf16.msra.mxu0 0
  %1388 = vmatprep.subr.bf16.mxu0 0
  %1389 = vmatpush2.bf16.msra.mxu0 0
  %1390 = vmatprep.subr.bf16.mxu0 0
  %1391 = vmatpush2.bf16.msra.mxu0 0
  %1392 = vmatprep.subr.bf16.mxu0 0
  %1393 = vmatpush2.bf16.msra.mxu0 0
  %1394 = vmatprep.subr.bf16.mxu0 0
  %1395 = vmatpush2.bf16.msra.mxu0 0
  %1396 = vmatprep.subr.bf16.mxu0 0
  %1397 = vmatpush2.bf16.msra.mxu0 0
  %1398 = vmatprep.mubr.bf16.mxu0 0
  %1399 = vmatmul.mubr.bf16.gmra.mxu0 %v594
  %v1400 = vpop.f32.mrf.mxu0
  %v1401 = vadd.f32 %v1342, %v1400
  %v1402 = vpop.f32.mrf.mxu0
  %v1403 = vpop.f32.mrf.mxu0
  %v1404 = vadd.f32 %v1343, %v1403
  %v1405 = vpop.f32.mrf.mxu0
  %1406 = vmatprep.mubr.bf16.mxu0 0
  %1407 = vmatmul.mubr.bf16.gmra.mxu0 %v595
  %v1408 = vpop.f32.mrf.mxu0
  %v1409 = vadd.f32 %v1344, %v1408
  %v1410 = vpop.f32.mrf.mxu0
  %v1411 = vpop.f32.mrf.mxu0
  %v1412 = vadd.f32 %v1345, %v1411
  %v1413 = vpop.f32.mrf.mxu0
  %1414 = vmatprep.mubr.bf16.mxu0 0
  %1415 = vmatmul.mubr.bf16.gmra.mxu0 %v596
  %v1416 = vpop.f32.mrf.mxu0
  %v1417 = vadd.f32 %v1346, %v1416
  %v1418 = vpop.f32.mrf.mxu0
  %v1419 = vpop.f32.mrf.mxu0
  %v1420 = vadd.f32 %v1347, %v1419
  %v1421 = vpop.f32.mrf.mxu0
  %1422 = vmatprep.mubr.bf16.mxu0 0
  %1423 = vmatmul.mubr.bf16.gmra.mxu0 %v597
  %v1424 = vpop.f32.mrf.mxu0
  %v1425 = vadd.f32 %v1348, %v1424
  %v1426 = vpop.f32.mrf.mxu0
  %v1427 = vpop.f32.mrf.mxu0
  %v1428 = vadd.f32 %v1349, %v1427
  %v1429 = vpop.f32.mrf.mxu0
  %1430 = vmatprep.mubr.bf16.mxu0 0
  %1431 = vmatmul.mubr.bf16.gmra.mxu0 %v598
  %v1432 = vpop.f32.mrf.mxu0
  %v1433 = vadd.f32 %v1350, %v1432
  %v1434 = vpop.f32.mrf.mxu0
  %v1435 = vpop.f32.mrf.mxu0
  %v1436 = vadd.f32 %v1351, %v1435
  %v1437 = vpop.f32.mrf.mxu0
  %1438 = vmatprep.mubr.bf16.mxu0 0
  %1439 = vmatmul.mubr.bf16.gmra.mxu0 %v599
  %v1440 = vpop.f32.mrf.mxu0
  %v1441 = vadd.f32 %v1352, %v1440
  %v1442 = vpop.f32.mrf.mxu0
  %v1443 = vpop.f32.mrf.mxu0
  %v1444 = vadd.f32 %v1353, %v1443
  %v1445 = vpop.f32.mrf.mxu0
  %1446 = vmatprep.mubr.bf16.mxu0 0
  %1447 = vmatmul.mubr.bf16.gmra.mxu0 %v600
  %v1448 = vpop.f32.mrf.mxu0
  %v1449 = vadd.f32 %v1354, %v1448
  %v1450 = vpop.f32.mrf.mxu0
  %v1451 = vpop.f32.mrf.mxu0
  %v1452 = vadd.f32 %v1355, %v1451
  %v1453 = vpop.f32.mrf.mxu0
  %1454 = vmatprep.mubr.bf16.mxu0 0
  %1455 = vmatmul.mubr.bf16.gmra.mxu0 %v601
  %v1456 = vpop.f32.mrf.mxu0
  %v1457 = vadd.f32 %v1356, %v1456
  %v1458 = vpop.f32.mrf.mxu0
  %v1459 = vpop.f32.mrf.mxu0
  %v1460 = vadd.f32 %v1357, %v1459
  %v1461 = vpop.f32.mrf.mxu0
  %1462 = vdwg.mxu0
  %v1463 = vpack.c.bf16 %v1404, %v1401
  %v1464 = vpack.c.bf16 %v1412, %v1409
  %v1465 = vpack.c.bf16 %v1420, %v1417
  %v1466 = vpack.c.bf16 %v1428, %v1425
  %v1467 = vpack.c.bf16 %v1436, %v1433
  %v1468 = vpack.c.bf16 %v1444, %v1441
  %v1469 = vpack.c.bf16 %v1452, %v1449
  %v1470 = vpack.c.bf16 %v1460, %v1457
  %1471 = vmatprep.subr.bf16.mxu0 0
  %1472 = vmatpush1.bf16.msra.mxu0 %v1470
  %1473 = vmatprep.subr.bf16.mxu0 0
  %1474 = vmatpush1.bf16.msra.mxu0 %v1469
  %1475 = vmatprep.subr.bf16.mxu0 0
  %1476 = vmatpush1.bf16.msra.mxu0 %v1468
  %1477 = vmatprep.subr.bf16.mxu0 0
  %1478 = vmatpush1.bf16.msra.mxu0 %v1467
  %1479 = vmatprep.subr.bf16.mxu0 0
  %1480 = vmatpush1.bf16.msra.mxu0 %v1466
  %1481 = vmatprep.subr.bf16.mxu0 0
  %1482 = vmatpush1.bf16.msra.mxu0 %v1465
  %1483 = vmatprep.subr.bf16.mxu0 0
  %1484 = vmatpush1.bf16.msra.mxu0 %v1464
  %1485 = vmatprep.subr.bf16.mxu0 0
  %1486 = vmatpush1.bf16.msra.mxu0 %v1463
  %1487 = vmatprep.subr.bf16.mxu0 0
  %1488 = vmatpush2.bf16.msra.mxu0 0
  %1489 = vmatprep.subr.bf16.mxu0 0
  %1490 = vmatpush2.bf16.msra.mxu0 0
  %1491 = vmatprep.subr.bf16.mxu0 0
  %1492 = vmatpush2.bf16.msra.mxu0 0
  %1493 = vmatprep.subr.bf16.mxu0 0
  %1494 = vmatpush2.bf16.msra.mxu0 0
  %1495 = vmatprep.subr.bf16.mxu0 0
  %1496 = vmatpush2.bf16.msra.mxu0 0
  %1497 = vmatprep.subr.bf16.mxu0 0
  %1498 = vmatpush2.bf16.msra.mxu0 0
  %1499 = vmatprep.subr.bf16.mxu0 0
  %1500 = vmatpush2.bf16.msra.mxu0 0
  %1501 = vmatprep.subr.bf16.mxu0 0
  %1502 = vmatpush2.bf16.msra.mxu0 0
  %1503 = vmatprep.mubr.bf16.mxu0 0
  %1504 = vmatmul.mubr.bf16.gmra.mxu0 %v594
  %v1505 = vpop.f32.mrf.mxu0
  %v1506 = vadd.f32 %v1342, %v1505
  %v1507 = vpop.f32.mrf.mxu0
  %v1508 = vpop.f32.mrf.mxu0
  %v1509 = vadd.f32 %v1343, %v1508
  %v1510 = vpop.f32.mrf.mxu0
  %1511 = vmatprep.mubr.bf16.mxu0 0
  %1512 = vmatmul.mubr.bf16.gmra.mxu0 %v595
  %v1513 = vpop.f32.mrf.mxu0
  %v1514 = vadd.f32 %v1344, %v1513
  %v1515 = vpop.f32.mrf.mxu0
  %v1516 = vpop.f32.mrf.mxu0
  %v1517 = vadd.f32 %v1345, %v1516
  %v1518 = vpop.f32.mrf.mxu0
  %1519 = vmatprep.mubr.bf16.mxu0 0
  %1520 = vmatmul.mubr.bf16.gmra.mxu0 %v596
  %v1521 = vpop.f32.mrf.mxu0
  %v1522 = vadd.f32 %v1346, %v1521
  %v1523 = vpop.f32.mrf.mxu0
  %v1524 = vpop.f32.mrf.mxu0
  %v1525 = vadd.f32 %v1347, %v1524
  %v1526 = vpop.f32.mrf.mxu0
  %1527 = vmatprep.mubr.bf16.mxu0 0
  %1528 = vmatmul.mubr.bf16.gmra.mxu0 %v597
  %v1529 = vpop.f32.mrf.mxu0
  %v1530 = vadd.f32 %v1348, %v1529
  %v1531 = vpop.f32.mrf.mxu0
  %v1532 = vpop.f32.mrf.mxu0
  %v1533 = vadd.f32 %v1349, %v1532
  %v1534 = vpop.f32.mrf.mxu0
  %1535 = vmatprep.mubr.bf16.mxu0 0
  %1536 = vmatmul.mubr.bf16.gmra.mxu0 %v598
  %v1537 = vpop.f32.mrf.mxu0
  %v1538 = vadd.f32 %v1350, %v1537
  %v1539 = vpop.f32.mrf.mxu0
  %v1540 = vpop.f32.mrf.mxu0
  %v1541 = vadd.f32 %v1351, %v1540
  %v1542 = vpop.f32.mrf.mxu0
  %1543 = vmatprep.mubr.bf16.mxu0 0
  %1544 = vmatmul.mubr.bf16.gmra.mxu0 %v599
  %v1545 = vpop.f32.mrf.mxu0
  %v1546 = vadd.f32 %v1352, %v1545
  %v1547 = vpop.f32.mrf.mxu0
  %v1548 = vpop.f32.mrf.mxu0
  %v1549 = vadd.f32 %v1353, %v1548
  %v1550 = vpop.f32.mrf.mxu0
  %1551 = vmatprep.mubr.bf16.mxu0 0
  %1552 = vmatmul.mubr.bf16.gmra.mxu0 %v600
  %v1553 = vpop.f32.mrf.mxu0
  %v1554 = vadd.f32 %v1354, %v1553
  %v1555 = vpop.f32.mrf.mxu0
  %v1556 = vpop.f32.mrf.mxu0
  %v1557 = vadd.f32 %v1355, %v1556
  %v1558 = vpop.f32.mrf.mxu0
  %1559 = vmatprep.mubr.bf16.mxu0 0
  %1560 = vmatmul.mubr.bf16.gmra.mxu0 %v601
  %v1561 = vpop.f32.mrf.mxu0
  %v1562 = vadd.f32 %v1356, %v1561
  %v1563 = vpop.f32.mrf.mxu0
  %v1564 = vpop.f32.mrf.mxu0
  %v1565 = vadd.f32 %v1357, %v1564
  %v1566 = vpop.f32.mrf.mxu0
  %1567 = vdwg.mxu0
  %v1568 = vpack.c.bf16 %v1509, %v1506
  %v1569 = vpack.c.bf16 %v1517, %v1514
  %v1570 = vpack.c.bf16 %v1525, %v1522
  %v1571 = vpack.c.bf16 %v1533, %v1530
  %v1572 = vpack.c.bf16 %v1541, %v1538
  %v1573 = vpack.c.bf16 %v1549, %v1546
  %v1574 = vpack.c.bf16 %v1557, %v1554
  %v1575 = vpack.c.bf16 %v1565, %v1562
  %1576 = vmatprep.subr.bf16.mxu0 0
  %1577 = vmatpush1.bf16.msra.mxu0 %v1575
  %1578 = vmatprep.subr.bf16.mxu0 0
  %1579 = vmatpush1.bf16.msra.mxu0 %v1574
  %1580 = vmatprep.subr.bf16.mxu0 0
  %1581 = vmatpush1.bf16.msra.mxu0 %v1573
  %1582 = vmatprep.subr.bf16.mxu0 0
  %1583 = vmatpush1.bf16.msra.mxu0 %v1572
  %1584 = vmatprep.subr.bf16.mxu0 0
  %1585 = vmatpush1.bf16.msra.mxu0 %v1571
  %1586 = vmatprep.subr.bf16.mxu0 0
  %1587 = vmatpush1.bf16.msra.mxu0 %v1570
  %1588 = vmatprep.subr.bf16.mxu0 0
  %1589 = vmatpush1.bf16.msra.mxu0 %v1569
  %1590 = vmatprep.subr.bf16.mxu0 0
  %1591 = vmatpush1.bf16.msra.mxu0 %v1568
  %1592 = vmatprep.subr.bf16.mxu0 0
  %1593 = vmatpush2.bf16.msra.mxu0 0
  %1594 = vmatprep.subr.bf16.mxu0 0
  %1595 = vmatpush2.bf16.msra.mxu0 0
  %1596 = vmatprep.subr.bf16.mxu0 0
  %1597 = vmatpush2.bf16.msra.mxu0 0
  %1598 = vmatprep.subr.bf16.mxu0 0
  %1599 = vmatpush2.bf16.msra.mxu0 0
  %1600 = vmatprep.subr.bf16.mxu0 0
  %1601 = vmatpush2.bf16.msra.mxu0 0
  %1602 = vmatprep.subr.bf16.mxu0 0
  %1603 = vmatpush2.bf16.msra.mxu0 0
  %1604 = vmatprep.subr.bf16.mxu0 0
  %1605 = vmatpush2.bf16.msra.mxu0 0
  %1606 = vmatprep.subr.bf16.mxu0 0
  %1607 = vmatpush2.bf16.msra.mxu0 0
  %1608 = vmatprep.mubr.bf16.mxu0 0
  %1609 = vmatmul.mubr.bf16.gmra.mxu0 %v594
  %v1610 = vpop.f32.mrf.mxu0
  %v1611 = vadd.f32 %v1342, %v1610
  %v1612 = vpop.f32.mrf.mxu0
  %v1613 = vpop.f32.mrf.mxu0
  %v1614 = vadd.f32 %v1343, %v1613
  %v1615 = vpop.f32.mrf.mxu0
  %1616 = vmatprep.mubr.bf16.mxu0 0
  %1617 = vmatmul.mubr.bf16.gmra.mxu0 %v595
  %v1618 = vpop.f32.mrf.mxu0
  %v1619 = vadd.f32 %v1344, %v1618
  %v1620 = vpop.f32.mrf.mxu0
  %v1621 = vpop.f32.mrf.mxu0
  %v1622 = vadd.f32 %v1345, %v1621
  %v1623 = vpop.f32.mrf.mxu0
  %1624 = vmatprep.mubr.bf16.mxu0 0
  %1625 = vmatmul.mubr.bf16.gmra.mxu0 %v596
  %v1626 = vpop.f32.mrf.mxu0
  %v1627 = vadd.f32 %v1346, %v1626
  %v1628 = vpop.f32.mrf.mxu0
  %v1629 = vpop.f32.mrf.mxu0
  %v1630 = vadd.f32 %v1347, %v1629
  %v1631 = vpop.f32.mrf.mxu0
  %1632 = vmatprep.mubr.bf16.mxu0 0
  %1633 = vmatmul.mubr.bf16.gmra.mxu0 %v597
  %v1634 = vpop.f32.mrf.mxu0
  %v1635 = vadd.f32 %v1348, %v1634
  %v1636 = vpop.f32.mrf.mxu0
  %v1637 = vpop.f32.mrf.mxu0
  %v1638 = vadd.f32 %v1349, %v1637
  %v1639 = vpop.f32.mrf.mxu0
  %1640 = vmatprep.mubr.bf16.mxu0 0
  %1641 = vmatmul.mubr.bf16.gmra.mxu0 %v598
  %v1642 = vpop.f32.mrf.mxu0
  %v1643 = vadd.f32 %v1350, %v1642
  %v1644 = vpop.f32.mrf.mxu0
  %v1645 = vpop.f32.mrf.mxu0
  %v1646 = vadd.f32 %v1351, %v1645
  %v1647 = vpop.f32.mrf.mxu0
  %1648 = vmatprep.mubr.bf16.mxu0 0
  %1649 = vmatmul.mubr.bf16.gmra.mxu0 %v599
  %v1650 = vpop.f32.mrf.mxu0
  %v1651 = vadd.f32 %v1352, %v1650
  %v1652 = vpop.f32.mrf.mxu0
  %v1653 = vpop.f32.mrf.mxu0
  %v1654 = vadd.f32 %v1353, %v1653
  %v1655 = vpop.f32.mrf.mxu0
  %1656 = vmatprep.mubr.bf16.mxu0 0
  %1657 = vmatmul.mubr.bf16.gmra.mxu0 %v600
  %v1658 = vpop.f32.mrf.mxu0
  %v1659 = vadd.f32 %v1354, %v1658
  %v1660 = vpop.f32.mrf.mxu0
  %v1661 = vpop.f32.mrf.mxu0
  %v1662 = vadd.f32 %v1355, %v1661
  %v1663 = vpop.f32.mrf.mxu0
  %1664 = vmatprep.mubr.bf16.mxu0 0
  %1665 = vmatmul.mubr.bf16.gmra.mxu0 %v601
  %v1666 = vpop.f32.mrf.mxu0
  %v1667 = vadd.f32 %v1356, %v1666
  %v1668 = vpop.f32.mrf.mxu0
  %v1669 = vpop.f32.mrf.mxu0
  %v1670 = vadd.f32 %v1357, %v1669
  %v1671 = vpop.f32.mrf.mxu0
  %1672 = vdwg.mxu0
  %v1673 = vpack.c.bf16 %v1614, %v1611
  %v1674 = vpack.c.bf16 %v1622, %v1619
  %v1675 = vpack.c.bf16 %v1630, %v1627
  %v1676 = vpack.c.bf16 %v1638, %v1635
  %v1677 = vpack.c.bf16 %v1646, %v1643
  %v1678 = vpack.c.bf16 %v1654, %v1651
  %v1679 = vpack.c.bf16 %v1662, %v1659
  %v1680 = vpack.c.bf16 %v1670, %v1667
  %1681 = vmatprep.subr.bf16.mxu0 0
  %1682 = vmatpush1.bf16.msra.mxu0 %v1680
  %1683 = vmatprep.subr.bf16.mxu0 0
  %1684 = vmatpush1.bf16.msra.mxu0 %v1679
  %1685 = vmatprep.subr.bf16.mxu0 0
  %1686 = vmatpush1.bf16.msra.mxu0 %v1678
  %1687 = vmatprep.subr.bf16.mxu0 0
  %1688 = vmatpush1.bf16.msra.mxu0 %v1677
  %1689 = vmatprep.subr.bf16.mxu0 0
  %1690 = vmatpush1.bf16.msra.mxu0 %v1676
  %1691 = vmatprep.subr.bf16.mxu0 0
  %1692 = vmatpush1.bf16.msra.mxu0 %v1675
  %1693 = vmatprep.subr.bf16.mxu0 0
  %1694 = vmatpush1.bf16.msra.mxu0 %v1674
  %1695 = vmatprep.subr.bf16.mxu0 0
  %1696 = vmatpush1.bf16.msra.mxu0 %v1673
  %1697 = vmatprep.subr.bf16.mxu0 0
  %1698 = vmatpush2.bf16.msra.mxu0 0
  %1699 = vmatprep.subr.bf16.mxu0 0
  %1700 = vmatpush2.bf16.msra.mxu0 0
  %1701 = vmatprep.subr.bf16.mxu0 0
  %1702 = vmatpush2.bf16.msra.mxu0 0
  %1703 = vmatprep.subr.bf16.mxu0 0
  %1704 = vmatpush2.bf16.msra.mxu0 0
  %1705 = vmatprep.subr.bf16.mxu0 0
  %1706 = vmatpush2.bf16.msra.mxu0 0
  %1707 = vmatprep.subr.bf16.mxu0 0
  %1708 = vmatpush2.bf16.msra.mxu0 0
  %1709 = vmatprep.subr.bf16.mxu0 0
  %1710 = vmatpush2.bf16.msra.mxu0 0
  %1711 = vmatprep.subr.bf16.mxu0 0
  %1712 = vmatpush2.bf16.msra.mxu0 0
  %1713 = vmatprep.mubr.bf16.mxu0 0
  %1714 = vmatmul.mubr.bf16.gmra.mxu0 %v594
  %v1715 = vpop.f32.mrf.mxu0
  %v1716 = vadd.f32 %v1342, %v1715
  %v1717 = vpop.f32.mrf.mxu0
  %v1718 = vpop.f32.mrf.mxu0
  %v1719 = vadd.f32 %v1343, %v1718
  %v1720 = vpop.f32.mrf.mxu0
  %1721 = vmatprep.mubr.bf16.mxu0 0
  %1722 = vmatmul.mubr.bf16.gmra.mxu0 %v595
  %v1723 = vpop.f32.mrf.mxu0
  %v1724 = vadd.f32 %v1344, %v1723
  %v1725 = vpop.f32.mrf.mxu0
  %v1726 = vpop.f32.mrf.mxu0
  %v1727 = vadd.f32 %v1345, %v1726
  %v1728 = vpop.f32.mrf.mxu0
  %1729 = vmatprep.mubr.bf16.mxu0 0
  %1730 = vmatmul.mubr.bf16.gmra.mxu0 %v596
  %v1731 = vpop.f32.mrf.mxu0
  %v1732 = vadd.f32 %v1346, %v1731
  %v1733 = vpop.f32.mrf.mxu0
  %v1734 = vpop.f32.mrf.mxu0
  %v1735 = vadd.f32 %v1347, %v1734
  %v1736 = vpop.f32.mrf.mxu0
  %1737 = vmatprep.mubr.bf16.mxu0 0
  %1738 = vmatmul.mubr.bf16.gmra.mxu0 %v597
  %v1739 = vpop.f32.mrf.mxu0
  %v1740 = vadd.f32 %v1348, %v1739
  %v1741 = vpop.f32.mrf.mxu0
  %v1742 = vpop.f32.mrf.mxu0
  %v1743 = vadd.f32 %v1349, %v1742
  %v1744 = vpop.f32.mrf.mxu0
  %1745 = vmatprep.mubr.bf16.mxu0 0
  %1746 = vmatmul.mubr.bf16.gmra.mxu0 %v598
  %v1747 = vpop.f32.mrf.mxu0
  %v1748 = vadd.f32 %v1350, %v1747
  %v1749 = vpop.f32.mrf.mxu0
  %v1750 = vpop.f32.mrf.mxu0
  %v1751 = vadd.f32 %v1351, %v1750
  %v1752 = vpop.f32.mrf.mxu0
  %1753 = vmatprep.mubr.bf16.mxu0 0
  %1754 = vmatmul.mubr.bf16.gmra.mxu0 %v599
  %v1755 = vpop.f32.mrf.mxu0
  %v1756 = vadd.f32 %v1352, %v1755
  %v1757 = vpop.f32.mrf.mxu0
  %v1758 = vpop.f32.mrf.mxu0
  %v1759 = vadd.f32 %v1353, %v1758
  %v1760 = vpop.f32.mrf.mxu0
  %1761 = vmatprep.mubr.bf16.mxu0 0
  %1762 = vmatmul.mubr.bf16.gmra.mxu0 %v600
  %v1763 = vpop.f32.mrf.mxu0
  %v1764 = vadd.f32 %v1354, %v1763
  %v1765 = vpop.f32.mrf.mxu0
  %v1766 = vpop.f32.mrf.mxu0
  %v1767 = vadd.f32 %v1355, %v1766
  %v1768 = vpop.f32.mrf.mxu0
  %1769 = vmatprep.mubr.bf16.mxu0 0
  %1770 = vmatmul.mubr.bf16.gmra.mxu0 %v601
  %v1771 = vpop.f32.mrf.mxu0
  %v1772 = vadd.f32 %v1356, %v1771
  %v1773 = vpop.f32.mrf.mxu0
  %v1774 = vpop.f32.mrf.mxu0
  %v1775 = vadd.f32 %v1357, %v1774
  %v1776 = vpop.f32.mrf.mxu0
  %1777 = vdwg.mxu0
  %v1778 = vmul.f32 %v1716, 0.5
  %v1779 = vmul.f32 %v1719, 0.5
  %v1780 = vmul.f32 %v1724, 0.5
  %v1781 = vmul.f32 %v1727, 0.5
  %v1782 = vmul.f32 %v1732, 0.5
  %v1783 = vmul.f32 %v1735, 0.5
  %v1784 = vmul.f32 %v1740, 0.5
  %v1785 = vmul.f32 %v1743, 0.5
  %v1786 = vmul.f32 %v1748, 0.5
  %v1787 = vmul.f32 %v1751, 0.5
  %v1788 = vmul.f32 %v1756, 0.5
  %v1789 = vmul.f32 %v1759, 0.5
  %v1790 = vmul.f32 %v1764, 0.5
  %v1791 = vmul.f32 %v1767, 0.5
  %v1792 = vmul.f32 %v1772, 0.5
  %v1793 = vmul.f32 %v1775, 0.5
  %v1794 = vmul.f32 %v1716, 0.70710677
  %v1795 = vmul.f32 %v1719, 0.70710677
  %v1796 = vmul.f32 %v1724, 0.70710677
  %v1797 = vmul.f32 %v1727, 0.70710677
  %v1798 = vmul.f32 %v1732, 0.70710677
  %v1799 = vmul.f32 %v1735, 0.70710677
  %v1800 = vmul.f32 %v1740, 0.70710677
  %v1801 = vmul.f32 %v1743, 0.70710677
  %v1802 = vmul.f32 %v1748, 0.70710677
  %v1803 = vmul.f32 %v1751, 0.70710677
  %v1804 = vmul.f32 %v1756, 0.70710677
  %v1805 = vmul.f32 %v1759, 0.70710677
  %v1806 = vmul.f32 %v1764, 0.70710677
  %v1807 = vmul.f32 %v1767, 0.70710677
  %v1808 = vmul.f32 %v1772, 0.70710677
  %v1809 = vmul.f32 %v1775, 0.70710677
  %v1810 = verf.f32.pop %v1794
  %v1811 = verf.f32.pop %v1795
  %v1812 = verf.f32.pop %v1796
  %v1813 = verf.f32.pop %v1797
  %v1814 = verf.f32.pop %v1798
  %v1815 = verf.f32.pop %v1799
  %v1816 = verf.f32.pop %v1800
  %v1817 = verf.f32.pop %v1801
  %v1818 = verf.f32.pop %v1802
  %v1819 = verf.f32.pop %v1803
  %v1820 = verf.f32.pop %v1804
  %v1821 = verf.f32.pop %v1805
  %v1822 = verf.f32.pop %v1806
  %v1823 = verf.f32.pop %v1807
  %v1824 = verf.f32.pop %v1808
  %v1825 = verf.f32.pop %v1809
  %v1826 = vadd.f32 %v1810, 1.0
  %v1827 = vadd.f32 %v1811, 1.0
  %v1828 = vadd.f32 %v1812, 1.0
  %v1829 = vadd.f32 %v1813, 1.0
  %v1830 = vadd.f32 %v1814, 1.0
  %v1831 = vadd.f32 %v1815, 1.0
  %v1832 = vadd.f32 %v1816, 1.0
  %v1833 = vadd.f32 %v1817, 1.0
  %v1834 = vadd.f32 %v1818, 1.0
  %v1835 = vadd.f32 %v1819, 1.0
  %v1836 = vadd.f32 %v1820, 1.0
  %v1837 = vadd.f32 %v1821, 1.0
  %v1838 = vadd.f32 %v1822, 1.0
  %v1839 = vadd.f32 %v1823, 1.0
  %v1840 = vadd.f32 %v1824, 1.0
  %v1841 = vadd.f32 %v1825, 1.0
  %v1842 = vmul.f32 %v1778, %v1826
  %v1843 = vmul.f32 %v1779, %v1827
  %v1844 = vmul.f32 %v1780, %v1828
  %v1845 = vmul.f32 %v1781, %v1829
  %v1846 = vmul.f32 %v1782, %v1830
  %v1847 = vmul.f32 %v1783, %v1831
  %v1848 = vmul.f32 %v1784, %v1832
  %v1849 = vmul.f32 %v1785, %v1833
  %v1850 = vmul.f32 %v1786, %v1834
  %v1851 = vmul.f32 %v1787, %v1835
  %v1852 = vmul.f32 %v1788, %v1836
  %v1853 = vmul.f32 %v1789, %v1837
  %v1854 = vmul.f32 %v1790, %v1838
  %v1855 = vmul.f32 %v1791, %v1839
  %v1856 = vmul.f32 %v1792, %v1840
  %v1857 = vmul.f32 %v1793, %v1841
  %v1858 = vsel %vm188, %v1842, 0.0
  %1859 = vadd.xlane.f32.xlu0 %v1858
  %v1860 = vpop.xlane.xlu0 %1859
  %v1861 = vsel %vm188, %v1843, 0.0
  %1862 = vadd.xlane.f32.xlu0 %v1861
  %v1863 = vpop.xlane.xlu0 %1862
  %v1864 = vsel %vm188, %v1844, 0.0
  %1865 = vadd.xlane.f32.xlu0 %v1864
  %v1866 = vpop.xlane.xlu0 %1865
  %v1867 = vsel %vm188, %v1845, 0.0
  %1868 = vadd.xlane.f32.xlu0 %v1867
  %v1869 = vpop.xlane.xlu0 %1868
  %v1870 = vsel %vm188, %v1846, 0.0
  %1871 = vadd.xlane.f32.xlu0 %v1870
  %v1872 = vpop.xlane.xlu0 %1871
  %v1873 = vsel %vm188, %v1847, 0.0
  %1874 = vadd.xlane.f32.xlu0 %v1873
  %v1875 = vpop.xlane.xlu0 %1874
  %v1876 = vsel %vm188, %v1848, 0.0
  %1877 = vadd.xlane.f32.xlu0 %v1876
  %v1878 = vpop.xlane.xlu0 %1877
  %v1879 = vsel %vm188, %v1849, 0.0
  %1880 = vadd.xlane.f32.xlu0 %v1879
  %v1881 = vpop.xlane.xlu0 %1880
  %v1882 = vsel %vm188, %v1850, 0.0
  %1883 = vadd.xlane.f32.xlu0 %v1882
  %v1884 = vpop.xlane.xlu0 %1883
  %v1885 = vsel %vm188, %v1851, 0.0
  %1886 = vadd.xlane.f32.xlu0 %v1885
  %v1887 = vpop.xlane.xlu0 %1886
  %v1888 = vsel %vm188, %v1852, 0.0
  %1889 = vadd.xlane.f32.xlu0 %v1888
  %v1890 = vpop.xlane.xlu0 %1889
  %v1891 = vsel %vm188, %v1853, 0.0
  %1892 = vadd.xlane.f32.xlu0 %v1891
  %v1893 = vpop.xlane.xlu0 %1892
  %v1894 = vsel %vm188, %v1854, 0.0
  %1895 = vadd.xlane.f32.xlu0 %v1894
  %v1896 = vpop.xlane.xlu0 %1895
  %v1897 = vsel %vm188, %v1855, 0.0
  %1898 = vadd.xlane.f32.xlu0 %v1897
  %v1899 = vpop.xlane.xlu0 %1898
  %v1900 = vsel %vm188, %v1856, 0.0
  %1901 = vadd.xlane.f32.xlu0 %v1900
  %v1902 = vpop.xlane.xlu0 %1901
  %v1903 = vsel %vm188, %v1857, 0.0
  %1904 = vadd.xlane.f32.xlu0 %v1903
  %v1905 = vpop.xlane.xlu0 %1904
  %v1906 = vmul.f32 %v1860, %v237
  %v1907 = vmul.f32 %v1863, %v237
  %v1908 = vmul.f32 %v1866, %v237
  %v1909 = vmul.f32 %v1869, %v237
  %v1910 = vmul.f32 %v1872, %v237
  %v1911 = vmul.f32 %v1875, %v237
  %v1912 = vmul.f32 %v1878, %v237
  %v1913 = vmul.f32 %v1881, %v237
  %v1914 = vmul.f32 %v1884, %v237
  %v1915 = vmul.f32 %v1887, %v237
  %v1916 = vmul.f32 %v1890, %v237
  %v1917 = vmul.f32 %v1893, %v237
  %v1918 = vmul.f32 %v1896, %v237
  %v1919 = vmul.f32 %v1899, %v237
  %v1920 = vmul.f32 %v1902, %v237
  %v1921 = vmul.f32 %v1905, %v237
  %v1922 = vsub.f32 %v1842, %v1906
  %v1923 = vsub.f32 %v1843, %v1907
  %v1924 = vsub.f32 %v1844, %v1908
  %v1925 = vsub.f32 %v1845, %v1909
  %v1926 = vsub.f32 %v1846, %v1910
  %v1927 = vsub.f32 %v1847, %v1911
  %v1928 = vsub.f32 %v1848, %v1912
  %v1929 = vsub.f32 %v1849, %v1913
  %v1930 = vsub.f32 %v1850, %v1914
  %v1931 = vsub.f32 %v1851, %v1915
  %v1932 = vsub.f32 %v1852, %v1916
  %v1933 = vsub.f32 %v1853, %v1917
  %v1934 = vsub.f32 %v1854, %v1918
  %v1935 = vsub.f32 %v1855, %v1919
  %v1936 = vsub.f32 %v1856, %v1920
  %v1937 = vsub.f32 %v1857, %v1921
  %v1938 = vmul.f32 %v1922, %v1922
  %v1939 = vmul.f32 %v1923, %v1923
  %v1940 = vmul.f32 %v1924, %v1924
  %v1941 = vmul.f32 %v1925, %v1925
  %v1942 = vmul.f32 %v1926, %v1926
  %v1943 = vmul.f32 %v1927, %v1927
  %v1944 = vmul.f32 %v1928, %v1928
  %v1945 = vmul.f32 %v1929, %v1929
  %v1946 = vmul.f32 %v1930, %v1930
  %v1947 = vmul.f32 %v1931, %v1931
  %v1948 = vmul.f32 %v1932, %v1932
  %v1949 = vmul.f32 %v1933, %v1933
  %v1950 = vmul.f32 %v1934, %v1934
  %v1951 = vmul.f32 %v1935, %v1935
  %v1952 = vmul.f32 %v1936, %v1936
  %v1953 = vmul.f32 %v1937, %v1937
  %v1954 = vsel %vm188, %v1938, 0.0
  %1955 = vadd.xlane.f32.xlu0 %v1954
  %v1956 = vpop.xlane.xlu0 %1955
  %v1957 = vsel %vm188, %v1939, 0.0
  %1958 = vadd.xlane.f32.xlu0 %v1957
  %v1959 = vpop.xlane.xlu0 %1958
  %v1960 = vsel %vm188, %v1940, 0.0
  %1961 = vadd.xlane.f32.xlu0 %v1960
  %v1962 = vpop.xlane.xlu0 %1961
  %v1963 = vsel %vm188, %v1941, 0.0
  %1964 = vadd.xlane.f32.xlu0 %v1963
  %v1965 = vpop.xlane.xlu0 %1964
  %v1966 = vsel %vm188, %v1942, 0.0
  %1967 = vadd.xlane.f32.xlu0 %v1966
  %v1968 = vpop.xlane.xlu0 %1967
  %v1969 = vsel %vm188, %v1943, 0.0
  %1970 = vadd.xlane.f32.xlu0 %v1969
  %v1971 = vpop.xlane.xlu0 %1970
  %v1972 = vsel %vm188, %v1944, 0.0
  %1973 = vadd.xlane.f32.xlu0 %v1972
  %v1974 = vpop.xlane.xlu0 %1973
  %v1975 = vsel %vm188, %v1945, 0.0
  %1976 = vadd.xlane.f32.xlu0 %v1975
  %v1977 = vpop.xlane.xlu0 %1976
  %v1978 = vsel %vm188, %v1946, 0.0
  %1979 = vadd.xlane.f32.xlu0 %v1978
  %v1980 = vpop.xlane.xlu0 %1979
  %v1981 = vsel %vm188, %v1947, 0.0
  %1982 = vadd.xlane.f32.xlu0 %v1981
  %v1983 = vpop.xlane.xlu0 %1982
  %v1984 = vsel %vm188, %v1948, 0.0
  %1985 = vadd.xlane.f32.xlu0 %v1984
  %v1986 = vpop.xlane.xlu0 %1985
  %v1987 = vsel %vm188, %v1949, 0.0
  %1988 = vadd.xlane.f32.xlu0 %v1987
  %v1989 = vpop.xlane.xlu0 %1988
  %v1990 = vsel %vm188, %v1950, 0.0
  %1991 = vadd.xlane.f32.xlu0 %v1990
  %v1992 = vpop.xlane.xlu0 %1991
  %v1993 = vsel %vm188, %v1951, 0.0
  %1994 = vadd.xlane.f32.xlu0 %v1993
  %v1995 = vpop.xlane.xlu0 %1994
  %v1996 = vsel %vm188, %v1952, 0.0
  %1997 = vadd.xlane.f32.xlu0 %v1996
  %v1998 = vpop.xlane.xlu0 %1997
  %v1999 = vsel %vm188, %v1953, 0.0
  %2000 = vadd.xlane.f32.xlu0 %v1999
  %v2001 = vpop.xlane.xlu0 %2000
  %v2002 = vmul.f32 %v1956, %v237
  %v2003 = vmul.f32 %v1959, %v237
  %v2004 = vmul.f32 %v1962, %v237
  %v2005 = vmul.f32 %v1965, %v237
  %v2006 = vmul.f32 %v1968, %v237
  %v2007 = vmul.f32 %v1971, %v237
  %v2008 = vmul.f32 %v1974, %v237
  %v2009 = vmul.f32 %v1977, %v237
  %v2010 = vmul.f32 %v1980, %v237
  %v2011 = vmul.f32 %v1983, %v237
  %v2012 = vmul.f32 %v1986, %v237
  %v2013 = vmul.f32 %v1989, %v237
  %v2014 = vmul.f32 %v1992, %v237
  %v2015 = vmul.f32 %v1995, %v237
  %v2016 = vmul.f32 %v1998, %v237
  %v2017 = vmul.f32 %v2001, %v237
  %v2018 = vadd.f32 %v2002, 1e-05
  %v2019 = vadd.f32 %v2003, 1e-05
  %v2020 = vadd.f32 %v2004, 1e-05
  %v2021 = vadd.f32 %v2005, 1e-05
  %v2022 = vadd.f32 %v2006, 1e-05
  %v2023 = vadd.f32 %v2007, 1e-05
  %v2024 = vadd.f32 %v2008, 1e-05
  %v2025 = vadd.f32 %v2009, 1e-05
  %v2026 = vadd.f32 %v2010, 1e-05
  %v2027 = vadd.f32 %v2011, 1e-05
  %v2028 = vadd.f32 %v2012, 1e-05
  %v2029 = vadd.f32 %v2013, 1e-05
  %v2030 = vadd.f32 %v2014, 1e-05
  %v2031 = vadd.f32 %v2015, 1e-05
  %v2032 = vadd.f32 %v2016, 1e-05
  %v2033 = vadd.f32 %v2017, 1e-05
  %v2034 = vrsqrt.pop %v2018
  %v2035 = vrsqrt.pop %v2019
  %v2036 = vrsqrt.pop %v2020
  %v2037 = vrsqrt.pop %v2021
  %v2038 = vrsqrt.pop %v2022
  %v2039 = vrsqrt.pop %v2023
  %v2040 = vrsqrt.pop %v2024
  %v2041 = vrsqrt.pop %v2025
  %v2042 = vrsqrt.pop %v2026
  %v2043 = vrsqrt.pop %v2027
  %v2044 = vrsqrt.pop %v2028
  %v2045 = vrsqrt.pop %v2029
  %v2046 = vrsqrt.pop %v2030
  %v2047 = vrsqrt.pop %v2031
  %v2048 = vrsqrt.pop %v2032
  %v2049 = vrsqrt.pop %v2033
  %v2050 = vmul.f32 %v1922, %v2034
  %v2051 = vmul.f32 %v1923, %v2035
  %v2052 = vmul.f32 %v1924, %v2036
  %v2053 = vmul.f32 %v1925, %v2037
  %v2054 = vmul.f32 %v1926, %v2038
  %v2055 = vmul.f32 %v1927, %v2039
  %v2056 = vmul.f32 %v1928, %v2040
  %v2057 = vmul.f32 %v1929, %v2041
  %v2058 = vmul.f32 %v1930, %v2042
  %v2059 = vmul.f32 %v1931, %v2043
  %v2060 = vmul.f32 %v1932, %v2044
  %v2061 = vmul.f32 %v1933, %v2045
  %v2062 = vmul.f32 %v1934, %v2046
  %v2063 = vmul.f32 %v1935, %v2047
  %v2064 = vmul.f32 %v1936, %v2048
  %v2065 = vmul.f32 %v1937, %v2049
  %v2066 = vmul.f32 %v2050, %v402
  %v2067 = vmul.f32 %v2051, %v402
  %v2068 = vmul.f32 %v2052, %v402
  %v2069 = vmul.f32 %v2053, %v402
  %v2070 = vmul.f32 %v2054, %v402
  %v2071 = vmul.f32 %v2055, %v402
  %v2072 = vmul.f32 %v2056, %v402
  %v2073 = vmul.f32 %v2057, %v402
  %v2074 = vmul.f32 %v2058, %v402
  %v2075 = vmul.f32 %v2059, %v402
  %v2076 = vmul.f32 %v2060, %v402
  %v2077 = vmul.f32 %v2061, %v402
  %v2078 = vmul.f32 %v2062, %v402
  %v2079 = vmul.f32 %v2063, %v402
  %v2080 = vmul.f32 %v2064, %v402
  %v2081 = vmul.f32 %v2065, %v402
  %v2082 = vadd.f32 %v2066, %v424
  %v2083 = vadd.f32 %v2067, %v424
  %v2084 = vadd.f32 %v2068, %v424
  %v2085 = vadd.f32 %v2069, %v424
  %v2086 = vadd.f32 %v2070, %v424
  %v2087 = vadd.f32 %v2071, %v424
  %v2088 = vadd.f32 %v2072, %v424
  %v2089 = vadd.f32 %v2073, %v424
  %v2090 = vadd.f32 %v2074, %v424
  %v2091 = vadd.f32 %v2075, %v424
  %v2092 = vadd.f32 %v2076, %v424
  %v2093 = vadd.f32 %v2077, %v424
  %v2094 = vadd.f32 %v2078, %v424
  %v2095 = vadd.f32 %v2079, %v424
  %v2096 = vadd.f32 %v2080, %v424
  %v2097 = vadd.f32 %v2081, %v424
  %v2098 = vpack.c.bf16 %v2083, %v2082
  %v2099 = vpack.c.bf16 %v2085, %v2084
  %v2100 = vpack.c.bf16 %v2087, %v2086
  %v2101 = vpack.c.bf16 %v2089, %v2088
  %v2102 = vpack.c.bf16 %v2091, %v2090
  %v2103 = vpack.c.bf16 %v2093, %v2092
  %v2104 = vpack.c.bf16 %v2095, %v2094
  %v2105 = vpack.c.bf16 %v2097, %v2096
  %v2106 = vld [vmem:[%s5] sm:$0xf]
  %v2107 = vld [vmem:[%s5 + $0x4] sm:$0xf]
  %v2108 = vld [vmem:[%s5 + $0x8] sm:$0xf]
  %v2109 = vld [vmem:[%s5 + $0xc] sm:$0xf]
  %v2110 = vld [vmem:[%s5 + $0x10] sm:$0xf]
  %v2111 = vld [vmem:[%s5 + $0x14] sm:$0xf]
  %v2112 = vld [vmem:[%s5 + $0x18] sm:$0xf]
  %v2113 = vld [vmem:[%s5 + $0x1c] sm:$0xf]
  %v2122 = vunpack.c.l.b16 %v2106
  %v2123 = vunpack.c.l.b16 %v2107
  %v2124 = vunpack.c.l.b16 %v2108
  %v2125 = vunpack.c.l.b16 %v2109
  %v2126 = vunpack.c.l.b16 %v2110
  %v2127 = vunpack.c.l.b16 %v2111
  %v2128 = vunpack.c.l.b16 %v2112
  %v2129 = vunpack.c.l.b16 %v2113
  %v2130 = vpack.c.b16 %v2123, %v2122
  %v2131 = vpack.c.b16 %v2125, %v2124
  %v2132 = vpack.c.b16 %v2127, %v2126
  %v2133 = vpack.c.b16 %v2129, %v2128
  %v2139 = vsel %vm188, %v2098, 0
  %v2142 = vsel %vm188, %v2099, 0
  %v2145 = vsel %vm188, %v2100, 0
  %v2148 = vsel %vm188, %v2101, 0
  %v2151 = vsel %vm188, %v2102, 0
  %v2154 = vsel %vm188, %v2103, 0
  %v2157 = vsel %vm188, %v2104, 0
  %v2160 = vsel %vm188, %v2105, 0
  %2162 = vmatprep.subr.bf16.mxu0 0
  %2163 = vmatpush1.bf16.msra.mxu0 0
  %2164 = vmatprep.subr.bf16.mxu0 0
  %2165 = vmatpush1.bf16.msra.mxu0 0
  %2166 = vmatprep.subr.bf16.mxu0 0
  %2167 = vmatpush1.bf16.msra.mxu0 0
  %2168 = vmatprep.subr.bf16.mxu0 0
  %2169 = vmatpush1.bf16.msra.mxu0 0
  %2170 = vmatprep.subr.bf16.mxu0 0
  %2171 = vmatpush1.bf16.msra.mxu0 %v2133
  %2172 = vmatprep.subr.bf16.mxu0 0
  %2173 = vmatpush1.bf16.msra.mxu0 %v2132
  %2174 = vmatprep.subr.bf16.mxu0 0
  %2175 = vmatpush1.bf16.msra.mxu0 %v2131
  %2176 = vmatprep.subr.bf16.mxu0 0
  %2177 = vmatpush1.bf16.msra.mxu0 %v2130
  %2178 = vmatprep.subr.bf16.mxu0 0
  %2179 = vmatpush2.bf16.msra.mxu0 0
  %2180 = vmatprep.subr.bf16.mxu0 0
  %2181 = vmatpush2.bf16.msra.mxu0 0
  %2182 = vmatprep.subr.bf16.mxu0 0
  %2183 = vmatpush2.bf16.msra.mxu0 0
  %2184 = vmatprep.subr.bf16.mxu0 0
  %2185 = vmatpush2.bf16.msra.mxu0 0
  %2186 = vmatprep.subr.bf16.mxu0 0
  %2187 = vmatpush2.bf16.msra.mxu0 0
  %2188 = vmatprep.subr.bf16.mxu0 0
  %2189 = vmatpush2.bf16.msra.mxu0 0
  %2190 = vmatprep.subr.bf16.mxu0 0
  %2191 = vmatpush2.bf16.msra.mxu0 0
  %2192 = vmatprep.subr.bf16.mxu0 0
  %2193 = vmatpush2.bf16.msra.mxu0 0
  %2194 = vmatprep.mubr.bf16.mxu0 0
  %2195 = vmatmul.mubr.bf16.gmra.mxu0 %v2139
  %v2196 = vpop.f32.mrf.mxu0
  %v2197 = vadd.f32 0.0, %v2196
  %v2198 = vpop.f32.mrf.mxu0
  %v2199 = vpop.f32.mrf.mxu0
  %v2200 = vadd.f32 0.0, %v2199
  %v2201 = vpop.f32.mrf.mxu0
  %2202 = vmatprep.mubr.bf16.mxu0 0
  %2203 = vmatmul.mubr.bf16.gmra.mxu0 %v2142
  %v2204 = vpop.f32.mrf.mxu0
  %v2205 = vadd.f32 0.0, %v2204
  %v2206 = vpop.f32.mrf.mxu0
  %v2207 = vpop.f32.mrf.mxu0
  %v2208 = vadd.f32 0.0, %v2207
  %v2209 = vpop.f32.mrf.mxu0
  %2210 = vmatprep.mubr.bf16.mxu0 0
  %2211 = vmatmul.mubr.bf16.gmra.mxu0 %v2145
  %v2212 = vpop.f32.mrf.mxu0
  %v2213 = vadd.f32 0.0, %v2212
  %v2214 = vpop.f32.mrf.mxu0
  %v2215 = vpop.f32.mrf.mxu0
  %v2216 = vadd.f32 0.0, %v2215
  %v2217 = vpop.f32.mrf.mxu0
  %2218 = vmatprep.mubr.bf16.mxu0 0
  %2219 = vmatmul.mubr.bf16.gmra.mxu0 %v2148
  %v2220 = vpop.f32.mrf.mxu0
  %v2221 = vadd.f32 0.0, %v2220
  %v2222 = vpop.f32.mrf.mxu0
  %v2223 = vpop.f32.mrf.mxu0
  %v2224 = vadd.f32 0.0, %v2223
  %v2225 = vpop.f32.mrf.mxu0
  %2226 = vmatprep.mubr.bf16.mxu0 0
  %2227 = vmatmul.mubr.bf16.gmra.mxu0 %v2151
  %v2228 = vpop.f32.mrf.mxu0
  %v2229 = vadd.f32 0.0, %v2228
  %v2230 = vpop.f32.mrf.mxu0
  %v2231 = vpop.f32.mrf.mxu0
  %v2232 = vadd.f32 0.0, %v2231
  %v2233 = vpop.f32.mrf.mxu0
  %2234 = vmatprep.mubr.bf16.mxu0 0
  %2235 = vmatmul.mubr.bf16.gmra.mxu0 %v2154
  %v2236 = vpop.f32.mrf.mxu0
  %v2237 = vadd.f32 0.0, %v2236
  %v2238 = vpop.f32.mrf.mxu0
  %v2239 = vpop.f32.mrf.mxu0
  %v2240 = vadd.f32 0.0, %v2239
  %v2241 = vpop.f32.mrf.mxu0
  %2242 = vmatprep.mubr.bf16.mxu0 0
  %2243 = vmatmul.mubr.bf16.gmra.mxu0 %v2157
  %v2244 = vpop.f32.mrf.mxu0
  %v2245 = vadd.f32 0.0, %v2244
  %v2246 = vpop.f32.mrf.mxu0
  %v2247 = vpop.f32.mrf.mxu0
  %v2248 = vadd.f32 0.0, %v2247
  %v2249 = vpop.f32.mrf.mxu0
  %2250 = vmatprep.mubr.bf16.mxu0 0
  %2251 = vmatmul.mubr.bf16.gmra.mxu0 %v2160
  %v2252 = vpop.f32.mrf.mxu0
  %v2253 = vadd.f32 0.0, %v2252
  %v2254 = vpop.f32.mrf.mxu0
  %v2255 = vpop.f32.mrf.mxu0
  %v2256 = vadd.f32 0.0, %v2255
  %v2257 = vpop.f32.mrf.mxu0
  %2258 = vdwg.mxu0
  %v2259 = vpack.c.bf16 %v2200, %v2197
  %v2260 = vpack.c.bf16 %v2208, %v2205
  %v2261 = vpack.c.bf16 %v2216, %v2213
  %v2262 = vpack.c.bf16 %v2224, %v2221
  %v2263 = vpack.c.bf16 %v2232, %v2229
  %v2264 = vpack.c.bf16 %v2240, %v2237
  %v2265 = vpack.c.bf16 %v2248, %v2245
  %v2266 = vpack.c.bf16 %v2256, %v2253
  %v2275 = vunpack.c.l.b16 %v2259
  %v2276 = vunpack.c.h.b16 %v2259
  %v2277 = vunpack.c.l.b16 %v2260
  %v2278 = vunpack.c.h.b16 %v2260
  %v2279 = vunpack.c.l.b16 %v2261
  %v2280 = vunpack.c.h.b16 %v2261
  %v2281 = vunpack.c.l.b16 %v2262
  %v2282 = vunpack.c.h.b16 %v2262
  %v2283 = vunpack.c.l.b16 %v2263
  %v2284 = vunpack.c.h.b16 %v2263
  %v2285 = vunpack.c.l.b16 %v2264
  %v2286 = vunpack.c.h.b16 %v2264
  %v2287 = vunpack.c.l.b16 %v2265
  %v2288 = vunpack.c.h.b16 %v2265
  %v2289 = vunpack.c.l.b16 %v2266
  %v2290 = vunpack.c.h.b16 %v2266
  %v2291 = vpack.c.b16 %v2275, %v2275
  %v2292 = vpack.c.b16 %v2276, %v2276
  %v2293 = vpack.c.b16 %v2277, %v2277
  %v2294 = vpack.c.b16 %v2278, %v2278
  %v2295 = vpack.c.b16 %v2279, %v2279
  %v2296 = vpack.c.b16 %v2280, %v2280
  %v2297 = vpack.c.b16 %v2281, %v2281
  %v2298 = vpack.c.b16 %v2282, %v2282
  %v2299 = vpack.c.b16 %v2283, %v2283
  %v2300 = vpack.c.b16 %v2284, %v2284
  %v2301 = vpack.c.b16 %v2285, %v2285
  %v2302 = vpack.c.b16 %v2286, %v2286
  %v2303 = vpack.c.b16 %v2287, %v2287
  %v2304 = vpack.c.b16 %v2288, %v2288
  %v2305 = vpack.c.b16 %v2289, %v2289
  %v2306 = vpack.c.b16 %v2290, %v2290
  %2323 = vst [vmem:[%s6] sm:$0xf] %v2291
  %2324 = vst [vmem:[%s6 + $0x4] sm:$0xf] %v2292
  %2325 = vst [vmem:[%s6 + $0x8] sm:$0xf] %v2293
  %2326 = vst [vmem:[%s6 + $0xc] sm:$0xf] %v2294
  %2327 = vst [vmem:[%s6 + $0x10] sm:$0xf] %v2295
  %2328 = vst [vmem:[%s6 + $0x14] sm:$0xf] %v2296
  %2329 = vst [vmem:[%s6 + $0x18] sm:$0xf] %v2297
  %2330 = vst [vmem:[%s6 + $0x1c] sm:$0xf] %v2298
  %2331 = vst [vmem:[%s6 + $0x20] sm:$0xf] %v2299
  %2332 = vst [vmem:[%s6 + $0x24] sm:$0xf] %v2300
  %2333 = vst [vmem:[%s6 + $0x28] sm:$0xf] %v2301
  %2334 = vst [vmem:[%s6 + $0x2c] sm:$0xf] %v2302
  %2335 = vst [vmem:[%s6 + $0x30] sm:$0xf] %v2303
  %2336 = vst [vmem:[%s6 + $0x34] sm:$0xf] %v2304
  %2337 = vst [vmem:[%s6 + $0x38] sm:$0xf] %v2305
  %2338 = vst [vmem:[%s6 + $0x3c] sm:$0xf] %v2306
  // Predicated region
  $region26: #{appnp_forward.1} parent=0 // pred_check
    _
  $region27: #{appnp_forward.1} parent=0 // pred_check_branch
    %2340 = sbr.rel (0) target = $region29
  $region28: #{appnp_forward.1} parent=0 // pred_region
    _
  $region29: #{appnp_forward.1} parent=0 // pred_fallthru
    _
  // Predicated region
  $region30: #{appnp_forward.1} parent=0 // pred_check
    _
  $region31: #{appnp_forward.1} parent=0 // pred_check_branch
    %2342 = sbr.rel (0) target = $region33
  $region32: #{appnp_forward.1} parent=0 // pred_region
    _
  $region33: #{appnp_forward.1} parent=0 // pred_fallthru
    _

</llo_original>
